<compile_context>
chip_gen: v6e
topology: v6e:2x2x1
jax: 0.10.0
libtpu: 0.0.40
codegen_flags: <defaults>
</compile_context>

<pallas_src>
import math

import jax
import jax.numpy as jnp
from jax.experimental import pallas as pl
from jax.experimental.pallas import tpu as pltpu  # noqa: F401  (TPU backend)

D_MODEL = 32
N_HEADS = 4
D_K = 8
D_V = 8
D_FF = 64
HD = N_HEADS * D_K          # 32 (== D_MODEL for this module)
EPS = 1e-5                  # nn.LayerNorm default
NEG_INF = -1e9


def _layer_norm(x, gamma, beta):
    mu = jnp.mean(x, axis=-1, keepdims=True)
    var = jnp.mean((x - mu) ** 2, axis=-1, keepdims=True)
    return (x - mu) * jax.lax.rsqrt(var + EPS) * gamma + beta


# ---------------------------------------------------------------------------
# Fused DecoderLayer kernel — single invocation, no grid.
# ---------------------------------------------------------------------------
def decoder_layer_kernel(bias_ref, dec_ref, enc_ref, w_ref, p_ref,
                         out_ref, attn_ref):
    """
    bias_ref : (BS, BS) f32   additive mask: 0 where attention allowed,
                              -1e9 where masked OR across different batches
    dec_ref  : (BS, D)  f32   decoder input, batch folded into rows
    enc_ref  : (BS, D)  f32   encoder output, batch folded into rows
    w_ref    : (3*D + D_FF, 4*HD) bf16 packed weights
    p_ref    : (8, 4*HD) f32  packed biases / LayerNorm params
    out_ref  : (BS, D)  f32
    attn_ref : (BS, 2*H*BS) f32  [stage1 heads | stage2 heads], lane-dense
    """
    f32, bf16 = jnp.float32, jnp.bfloat16

    neg = bias_ref[...]                # (BS, BS)
    x_dec = dec_ref[...]               # (BS, D)
    x_enc = enc_ref[...]               # (BS, D)

    pv = p_ref[...]                    # (8, 4*HD) f32
    b1_row = pv[0:1, :]                # [bq1*s | bk1 | bv1 | bo1]
    b2_row = pv[1:2, :]                # [bq2*s | bk2 | bv2 | bo2]
    ln_row = pv[2:3, :]                # [g1 | be1 | g2 | be2]
    ff_row = pv[3:4, :]                # [b_ff1(64) | b_ff2(32) | g3(32)]
    be3 = pv[4:5, 0:D_MODEL]

    g1, be1 = ln_row[:, 0:HD], ln_row[:, HD:2 * HD]
    g2, be2 = ln_row[:, 2 * HD:3 * HD], ln_row[:, 3 * HD:4 * HD]
    bf1 = ff_row[:, 0:D_FF]
    bf2 = ff_row[:, D_FF:D_FF + D_MODEL]
    g3 = ff_row[:, D_FF + D_MODEL:D_FF + 2 * D_MODEL]

    def attention(x_q, x_kv, w_stage, b_row, ln_g, ln_b, shared_qkv):
        # Fused [Q|K|V|O] projection: one (BS,D)@(D,4*HD) MXU pass per input.
        proj_q = jnp.dot(x_q.astype(bf16), w_stage,
                         preferred_element_type=f32) + b_row
        if shared_qkv:
            proj_kv = proj_q
        else:
            proj_kv = jnp.dot(x_kv.astype(bf16), w_stage,
                              preferred_element_type=f32) + b_row
        q = proj_q[:, 0 * HD:1 * HD]       # (BS, HD)  scale folded into Wq/bq
        k = proj_kv[:, 1 * HD:2 * HD]
        v = proj_kv[:, 2 * HD:3 * HD]
        bo = b_row[:, 3 * HD:4 * HD]       # (1, D)

        attn_heads, ctx_heads = [], []
        for h in range(N_HEADS):           # statically unrolled, 4 heads
            sl = slice(h * D_K, (h + 1) * D_K)
            qh = q[:, sl].astype(bf16)
            kh = k[:, sl].astype(bf16)
            vh = v[:, sl].astype(bf16)
            # scores over the full (BS, BS) block; cross-batch entries are
            # killed by the block-diagonal additive mask `neg`.
            s = jnp.einsum('qe,ke->qk', qh, kh,
                           preferred_element_type=f32) + neg
            m = jnp.max(s, axis=-1, keepdims=True)
            e = jnp.exp(s - m)
            a = e * pl.reciprocal(jnp.sum(e, axis=-1, keepdims=True),
                                  approx=True)
            attn_heads.append(a)                                   # (BS, BS)
            ctx_heads.append(jnp.dot(a.astype(bf16), vh,
                                     preferred_element_type=f32))  # (BS, Dv)
        ctx = jnp.concatenate(ctx_heads, axis=-1)          # (BS, H*Dv)
        attn_all = jnp.concatenate(attn_heads, axis=-1)    # (BS, H*BS)
        wo = w_stage[:, 3 * HD:4 * HD]                     # (H*Dv, D) bf16
        proj_o = jnp.dot(ctx.astype(bf16), wo,
                         preferred_element_type=f32) + bo
        return _layer_norm(proj_o + x_q, ln_g, ln_b), attn_all

    # Stage 1: masked self-attention (+ residual + LayerNorm)
    y1, attn1 = attention(x_dec, x_dec, w_ref[0:D_MODEL, :], b1_row,
                          g1, be1, shared_qkv=True)
    # Stage 2: enc-dec attention — reuses the same mask, as the module does
    y2, attn2 = attention(y1, x_enc, w_ref[D_MODEL:2 * D_MODEL, :], b2_row,
                          g2, be2, shared_qkv=False)
    # Stage 3: position-wise FFN (+ residual + LayerNorm)
    w1 = w_ref[2 * D_MODEL:3 * D_MODEL, 0:D_FF]               # (D, D_FF) bf16
    w2 = w_ref[3 * D_MODEL:3 * D_MODEL + D_FF, 0:D_MODEL]     # (D_FF, D) bf16
    h = jnp.maximum(
        jnp.dot(y2.astype(bf16), w1, preferred_element_type=f32) + bf1, 0.0)
    f = jnp.dot(h.astype(bf16), w2, preferred_element_type=f32) + bf2

    out_ref[...] = _layer_norm(f + y2, g3, be3)
    attn_ref[...] = jnp.concatenate([attn1, attn2], axis=-1)   # one dense store


# ---------------------------------------------------------------------------
# Host-side parameter packing: 2 lane-aligned slabs (weights bf16, biases f32)
# ---------------------------------------------------------------------------
def _pack_params(params):
    scale = 1.0 / math.sqrt(D_K)
    sa, ca, ff = params["self_attn"], params["enc_deco_attn"], params["ffn"]

    def attn_w(p):   # (D, 4*HD): [Wq*scale | Wk | Wv | Wo]
        return jnp.concatenate([p["wq"] * scale, p["wk"], p["wv"], p["wo"]],
                               axis=1)

    def attn_b(p):   # (1, 4*HD): [bq*scale | bk | bv | bo]
        return jnp.concatenate([p["bq"] * scale, p["bk"], p["bv"], p["bo"]],
                               axis=1)

    w_rows = 3 * D_MODEL + D_FF
    w_slab = jnp.zeros((w_rows, 4 * HD), jnp.float32)
    w_slab = w_slab.at[0:D_MODEL, :].set(attn_w(sa))
    w_slab = w_slab.at[D_MODEL:2 * D_MODEL, :].set(attn_w(ca))
    w_slab = w_slab.at[2 * D_MODEL:3 * D_MODEL, 0:D_FF].set(ff["w1"])
    w_slab = w_slab.at[3 * D_MODEL:3 * D_MODEL + D_FF, 0:D_MODEL].set(ff["w2"])

    p_slab = jnp.zeros((8, 4 * HD), jnp.float32)
    p_slab = p_slab.at[0:1, :].set(attn_b(sa))
    p_slab = p_slab.at[1:2, :].set(attn_b(ca))
    p_slab = p_slab.at[2:3, :].set(jnp.concatenate(
        [sa["gamma"], sa["beta"], ca["gamma"], ca["beta"]], axis=1))
    p_slab = p_slab.at[3:4, :].set(jnp.concatenate(
        [ff["b1"], ff["b2"], ff["gamma"]], axis=1))
    p_slab = p_slab.at[4:5, 0:D_MODEL].set(ff["beta"])
    return w_slab.astype(jnp.bfloat16), p_slab


# ---------------------------------------------------------------------------
# DecoderLayer forward (matches the PyTorch module, incl. reusing the
# self-attention mask for the enc-dec attention, as the original code does)
# ---------------------------------------------------------------------------
@jax.jit
def decoder_layer(deco_inputs, enc_output, deco_self_attn_mask, params):
    B, S, D = deco_inputs.shape
    assert D == D_MODEL
    BS = B * S
    w_slab, p_slab = _pack_params(params)

    # additive mask bias (0 allowed / -1e9 masked), block-diagonal over batch
    allowed = 1.0 - deco_self_attn_mask                        # (B,S,S)
    same_b = jnp.eye(B, dtype=jnp.float32)[:, None, :, None]   # (B,1,B,1)
    bias = jnp.where((same_b * allowed[:, :, None, :]) > 0.5,
                     0.0, NEG_INF).astype(jnp.float32)         # (B,S,B,S)
    bias = bias.reshape(BS, BS)

    dec_flat = deco_inputs.reshape(BS, D)
    enc_flat = enc_output.reshape(BS, D)

    out_flat, attn_slab = pl.pallas_call(
        decoder_layer_kernel,
        out_shape=(
            jax.ShapeDtypeStruct((BS, D_MODEL), jnp.float32),
            jax.ShapeDtypeStruct((BS, 2 * N_HEADS * BS), jnp.float32),
        ),
    )(bias, dec_flat, enc_flat, w_slab, p_slab)

    # unpack the lane-dense attention slab back to (B, H, S, S)
    idx = jnp.arange(B)

    def unpack(part):                               # part: (BS, H*BS)
        r = part.reshape(B, S, N_HEADS, B, S)
        r = r[idx, :, :, idx, :]                    # (B, S, H, S)  block-diag
        return jnp.transpose(r, (0, 2, 1, 3))       # (B, H, S, S)

    deco_attn = unpack(attn_slab[:, :N_HEADS * BS])
    dec_enc_attn = unpack(attn_slab[:, N_HEADS * BS:])
    return out_flat.reshape(B, S, D_MODEL), deco_attn, dec_enc_attn


# ---------------------------------------------------------------------------
# Pure-JAX reference (mirrors the PyTorch module) for a sanity check
# ---------------------------------------------------------------------------
def _ref_ln(x, g, b):
    mu = x.mean(-1, keepdims=True)
    var = ((x - mu) ** 2).mean(-1, keepdims=True)
    return (x - mu) * jax.lax.rsqrt(var + EPS) * g + b


def _ref_attention(x_q, x_kv, p, mask):
    B, S, _ = x_q.shape
    q = (x_q @ p["wq"] + p["bq"]).reshape(B, S, N_HEADS, D_K).transpose(0, 2, 1, 3)
    k = (x_kv @ p["wk"] + p["bk"]).reshape(B, S, N_HEADS, D_K).transpose(0, 2, 1, 3)
    v = (x_kv @ p["wv"] + p["bv"]).reshape(B, S, N_HEADS, D_V).transpose(0, 2, 1, 3)
    scores = jnp.einsum('bhqd,bhkd->bhqk', q, k) / math.sqrt(D_K)
    scores = jnp.where(mask[:, None] > 0.5, -1e9, scores)
    attn = jax.nn.softmax(scores, axis=-1)
    ctx = jnp.einsum('bhqk,bhkd->bhqd', attn, v)
    ctx = ctx.transpose(0, 2, 1, 3).reshape(B, S, N_HEADS * D_V)
    out = ctx @ p["wo"] + p["bo"]
    return _ref_ln(out + x_q, p["gamma"], p["beta"]), attn


def _ref_decoder_layer(dec, enc, mask, params):
    y1, a1 = _ref_attention(dec, dec, params["self_attn"], mask)
    y2, a2 = _ref_attention(y1, enc, params["enc_deco_attn"], mask)
    f = params["ffn"]
    h = jnp.maximum(y2 @ f["w1"] + f["b1"], 0.0)
    y3 = h @ f["w2"] + f["b2"]
    return _ref_ln(y3 + y2, f["gamma"], f["beta"]), a1, a2


# ---------------------------------------------------------------------------
# Deterministic parameter init (synthetic, not a checkpoint)
# ---------------------------------------------------------------------------
def init_attn_params(key):
    ks = jax.random.split(key, 8)
    s = 0.05
    return {
        "wq": s * jax.random.normal(ks[0], (D_MODEL, N_HEADS * D_K), jnp.float32),
        "bq": s * jax.random.normal(ks[1], (1, N_HEADS * D_K), jnp.float32),
        "wk": s * jax.random.normal(ks[2], (D_MODEL, N_HEADS * D_K), jnp.float32),
        "bk": s * jax.random.normal(ks[3], (1, N_HEADS * D_K), jnp.float32),
        "wv": s * jax.random.normal(ks[4], (D_MODEL, N_HEADS * D_V), jnp.float32),
        "bv": s * jax.random.normal(ks[5], (1, N_HEADS * D_V), jnp.float32),
        "wo": s * jax.random.normal(ks[6], (N_HEADS * D_V, D_MODEL), jnp.float32),
        "bo": s * jax.random.normal(ks[7], (1, D_MODEL), jnp.float32),
        "gamma": jnp.ones((1, D_MODEL), jnp.float32),
        "beta": jnp.zeros((1, D_MODEL), jnp.float32),
    }


def init_ffn_params(key):
    ks = jax.random.split(key, 4)
    s = 0.05
    return {
        "w1": s * jax.random.normal(ks[0], (D_MODEL, D_FF), jnp.float32),
        "b1": s * jax.random.normal(ks[1], (1, D_FF), jnp.float32),
        "w2": s * jax.random.normal(ks[2], (D_FF, D_MODEL), jnp.float32),
        "b2": s * jax.random.normal(ks[3], (1, D_MODEL), jnp.float32),
        "gamma": jnp.ones((1, D_MODEL), jnp.float32),
        "beta": jnp.zeros((1, D_MODEL), jnp.float32),
    }


if __name__ == "__main__":
    B, S = 2, 8
    root = jax.random.PRNGKey(0)
    k_in, k_enc, k_sa, k_ca, k_ff = jax.random.split(root, 5)

    deco_inputs = jax.random.normal(k_in, (B, S, D_MODEL), jnp.float32)
    enc_output = jax.random.normal(k_enc, (B, S, D_MODEL), jnp.float32)
    # causal (subsequent) mask: 1.0 above the diagonal == masked
    causal = jnp.triu(jnp.ones((S, S), jnp.float32), k=1)
    deco_self_attn_mask = jnp.broadcast_to(causal, (B, S, S))

    params = {
        "self_attn": init_attn_params(k_sa),
        "enc_deco_attn": init_attn_params(k_ca),
        "ffn": init_ffn_params(k_ff),
    }

    enc_outputs, deco_attn, dec_enc_attn = decoder_layer(
        deco_inputs, enc_output, deco_self_attn_mask, params)
    jax.block_until_ready((enc_outputs, deco_attn, dec_enc_attn))

    assert enc_outputs.shape == (B, S, D_MODEL)
    assert deco_attn.shape == (B, N_HEADS, S, S)
    assert dec_enc_attn.shape == (B, N_HEADS, S, S)
    assert bool(jnp.all(jnp.isfinite(enc_outputs)))

    # Loose-tolerance structural check against a pure-JAX f32 reference
    # (loose because the kernel uses bf16 MXU operands + approx reciprocal).
    ref_out, ref_a1, ref_a2 = _ref_decoder_layer(
        deco_inputs, enc_output, deco_self_attn_mask, params)
    assert float(jnp.max(jnp.abs(enc_outputs - ref_out))) < 5e-2
    assert float(jnp.max(jnp.abs(deco_attn - ref_a1))) < 5e-2
    assert float(jnp.max(jnp.abs(dec_enc_attn - ref_a2))) < 5e-2

    print("KERNEL_OK")
</pallas_src>

<mosaic_0001>
module attributes {stable_mosaic.version = 11 : i64} {
  func.func @decoder_layer_kernel(%arg0: memref<16x16xf32, #tpu.memory_space<vmem>>, %arg1: memref<16x32xf32, #tpu.memory_space<vmem>>, %arg2: memref<16x32xf32, #tpu.memory_space<vmem>>, %arg3: memref<160x128xbf16, #tpu.memory_space<vmem>>, %arg4: memref<8x128xf32, #tpu.memory_space<vmem>>, %arg5: memref<16x32xf32, #tpu.memory_space<vmem>>, %arg6: memref<16x128xf32, #tpu.memory_space<vmem>>) attributes {dimension_semantics = [], scalar_prefetch = 0 : i64, scratch_operands = 0 : i64, tpu.core_type = #tpu.core_type<tc>} {
    %c0 = arith.constant 0 : index
    %c0_0 = arith.constant 0 : index
    %0 = vector.load %arg0[%c0, %c0_0] : memref<16x16xf32, #tpu.memory_space<vmem>>, vector<16x16xf32>
    %c0_1 = arith.constant 0 : index
    %c0_2 = arith.constant 0 : index
    %1 = vector.load %arg1[%c0_1, %c0_2] : memref<16x32xf32, #tpu.memory_space<vmem>>, vector<16x32xf32>
    %c0_3 = arith.constant 0 : index
    %c0_4 = arith.constant 0 : index
    %2 = vector.load %arg2[%c0_3, %c0_4] : memref<16x32xf32, #tpu.memory_space<vmem>>, vector<16x32xf32>
    %c0_5 = arith.constant 0 : index
    %c0_6 = arith.constant 0 : index
    %3 = vector.load %arg4[%c0_5, %c0_6] : memref<8x128xf32, #tpu.memory_space<vmem>>, vector<8x128xf32>
    %4 = vector.extract_strided_slice %3 {offsets = [0, 0], sizes = [1, 128], strides = [1, 1]} : vector<8x128xf32> to vector<1x128xf32>
    %5 = vector.extract_strided_slice %3 {offsets = [1, 0], sizes = [1, 128], strides = [1, 1]} : vector<8x128xf32> to vector<1x128xf32>
    %6 = vector.extract_strided_slice %3 {offsets = [2, 0], sizes = [1, 128], strides = [1, 1]} : vector<8x128xf32> to vector<1x128xf32>
    %7 = vector.extract_strided_slice %3 {offsets = [3, 0], sizes = [1, 128], strides = [1, 1]} : vector<8x128xf32> to vector<1x128xf32>
    %8 = vector.extract_strided_slice %3 {offsets = [4, 0], sizes = [1, 32], strides = [1, 1]} : vector<8x128xf32> to vector<1x32xf32>
    %9 = vector.extract_strided_slice %6 {offsets = [0, 0], sizes = [1, 32], strides = [1, 1]} : vector<1x128xf32> to vector<1x32xf32>
    %10 = vector.extract_strided_slice %6 {offsets = [0, 32], sizes = [1, 32], strides = [1, 1]} : vector<1x128xf32> to vector<1x32xf32>
    %11 = vector.extract_strided_slice %6 {offsets = [0, 64], sizes = [1, 32], strides = [1, 1]} : vector<1x128xf32> to vector<1x32xf32>
    %12 = vector.extract_strided_slice %6 {offsets = [0, 96], sizes = [1, 32], strides = [1, 1]} : vector<1x128xf32> to vector<1x32xf32>
    %13 = vector.extract_strided_slice %7 {offsets = [0, 0], sizes = [1, 64], strides = [1, 1]} : vector<1x128xf32> to vector<1x64xf32>
    %14 = vector.extract_strided_slice %7 {offsets = [0, 64], sizes = [1, 32], strides = [1, 1]} : vector<1x128xf32> to vector<1x32xf32>
    %15 = vector.extract_strided_slice %7 {offsets = [0, 96], sizes = [1, 32], strides = [1, 1]} : vector<1x128xf32> to vector<1x32xf32>
    %c0_7 = arith.constant 0 : index
    %c0_8 = arith.constant 0 : index
    %16 = vector.load %arg3[%c0_7, %c0_8] : memref<160x128xbf16, #tpu.memory_space<vmem>>, vector<32x128xbf16>
    %17 = arith.truncf %1 : vector<16x32xf32> to vector<16x32xbf16>
    %cst = arith.constant dense<0.000000e+00> : vector<16x128xf32>
    %18 = tpu.matmul %17, %16, %cst {dimension_numbers = #tpu.dot_dimension_numbers<[1], [0], [0], [1], [0, 0, 1, 1], [], []>} : vector<16x32xbf16>, vector<32x128xbf16>, vector<16x128xf32> -> vector<16x128xf32>
    %19 = vector.broadcast %4 : vector<1x128xf32> to vector<16x128xf32>
    %20 = arith.addf %18, %19 : vector<16x128xf32>
    %21 = vector.extract_strided_slice %20 {offsets = [0, 0], sizes = [16, 32], strides = [1, 1]} : vector<16x128xf32> to vector<16x32xf32>
    %22 = vector.extract_strided_slice %20 {offsets = [0, 32], sizes = [16, 32], strides = [1, 1]} : vector<16x128xf32> to vector<16x32xf32>
    %23 = vector.extract_strided_slice %20 {offsets = [0, 64], sizes = [16, 32], strides = [1, 1]} : vector<16x128xf32> to vector<16x32xf32>
    %24 = vector.extract_strided_slice %4 {offsets = [0, 96], sizes = [1, 32], strides = [1, 1]} : vector<1x128xf32> to vector<1x32xf32>
    %25 = vector.extract_strided_slice %21 {offsets = [0, 0], sizes = [16, 8], strides = [1, 1]} : vector<16x32xf32> to vector<16x8xf32>
    %26 = arith.truncf %25 : vector<16x8xf32> to vector<16x8xbf16>
    %27 = vector.extract_strided_slice %22 {offsets = [0, 0], sizes = [16, 8], strides = [1, 1]} : vector<16x32xf32> to vector<16x8xf32>
    %28 = arith.truncf %27 : vector<16x8xf32> to vector<16x8xbf16>
    %29 = vector.extract_strided_slice %23 {offsets = [0, 0], sizes = [16, 8], strides = [1, 1]} : vector<16x32xf32> to vector<16x8xf32>
    %30 = arith.truncf %29 : vector<16x8xf32> to vector<16x8xbf16>
    "tpu.trace_start"() <{level = 10 : i32, message = "qe,ke->qk"}> : () -> ()
    %cst_9 = arith.constant dense<0.000000e+00> : vector<16x16xf32>
    %31 = tpu.matmul %26, %28, %cst_9 {dimension_numbers = #tpu.dot_dimension_numbers<[1], [1], [0], [0], [0, 0, 1, 0], [], []>} : vector<16x8xbf16>, vector<16x8xbf16>, vector<16x16xf32> -> vector<16x16xf32>
    "tpu.trace_stop"() : () -> ()
    %32 = arith.addf %31, %0 : vector<16x16xf32>
    %cst_10 = arith.constant dense<0xFF800000> : vector<16xf32>
    %33 = vector.multi_reduction <maximumf>, %32, %cst_10 [1] : vector<16x16xf32> to vector<16xf32>
    %34 = vector.shape_cast %33 : vector<16xf32> to vector<16x1xf32>
    %35 = vector.broadcast %34 : vector<16x1xf32> to vector<16x16xf32>
    %36 = arith.subf %32, %35 : vector<16x16xf32>
    %37 = math.exp %36 : vector<16x16xf32>
    %cst_11 = arith.constant dense<0.000000e+00> : vector<16xf32>
    %38 = vector.multi_reduction <add>, %37, %cst_11 [1] : vector<16x16xf32> to vector<16xf32>
    %39 = vector.shape_cast %38 : vector<16xf32> to vector<16x1xf32>
    %40 = tpu.reciprocal %39 {approx = true} : vector<16x1xf32> -> vector<16x1xf32>
    %41 = vector.broadcast %40 : vector<16x1xf32> to vector<16x16xf32>
    %42 = arith.mulf %37, %41 : vector<16x16xf32>
    %43 = arith.truncf %42 : vector<16x16xf32> to vector<16x16xbf16>
    %cst_12 = arith.constant dense<0.000000e+00> : vector<16x8xf32>
    %44 = tpu.matmul %43, %30, %cst_12 {dimension_numbers = #tpu.dot_dimension_numbers<[1], [0], [0], [1], [0, 0, 1, 1], [], []>} : vector<16x16xbf16>, vector<16x8xbf16>, vector<16x8xf32> -> vector<16x8xf32>
    %45 = vector.extract_strided_slice %21 {offsets = [0, 8], sizes = [16, 8], strides = [1, 1]} : vector<16x32xf32> to vector<16x8xf32>
    %46 = arith.truncf %45 : vector<16x8xf32> to vector<16x8xbf16>
    %47 = vector.extract_strided_slice %22 {offsets = [0, 8], sizes = [16, 8], strides = [1, 1]} : vector<16x32xf32> to vector<16x8xf32>
    %48 = arith.truncf %47 : vector<16x8xf32> to vector<16x8xbf16>
    %49 = vector.extract_strided_slice %23 {offsets = [0, 8], sizes = [16, 8], strides = [1, 1]} : vector<16x32xf32> to vector<16x8xf32>
    %50 = arith.truncf %49 : vector<16x8xf32> to vector<16x8xbf16>
    "tpu.trace_start"() <{level = 10 : i32, message = "qe,ke->qk"}> : () -> ()
    %cst_13 = arith.constant dense<0.000000e+00> : vector<16x16xf32>
    %51 = tpu.matmul %46, %48, %cst_13 {dimension_numbers = #tpu.dot_dimension_numbers<[1], [1], [0], [0], [0, 0, 1, 0], [], []>} : vector<16x8xbf16>, vector<16x8xbf16>, vector<16x16xf32> -> vector<16x16xf32>
    "tpu.trace_stop"() : () -> ()
    %52 = arith.addf %51, %0 : vector<16x16xf32>
    %cst_14 = arith.constant dense<0xFF800000> : vector<16xf32>
    %53 = vector.multi_reduction <maximumf>, %52, %cst_14 [1] : vector<16x16xf32> to vector<16xf32>
    %54 = vector.shape_cast %53 : vector<16xf32> to vector<16x1xf32>
    %55 = vector.broadcast %54 : vector<16x1xf32> to vector<16x16xf32>
    %56 = arith.subf %52, %55 : vector<16x16xf32>
    %57 = math.exp %56 : vector<16x16xf32>
    %cst_15 = arith.constant dense<0.000000e+00> : vector<16xf32>
    %58 = vector.multi_reduction <add>, %57, %cst_15 [1] : vector<16x16xf32> to vector<16xf32>
    %59 = vector.shape_cast %58 : vector<16xf32> to vector<16x1xf32>
    %60 = tpu.reciprocal %59 {approx = true} : vector<16x1xf32> -> vector<16x1xf32>
    %61 = vector.broadcast %60 : vector<16x1xf32> to vector<16x16xf32>
    %62 = arith.mulf %57, %61 : vector<16x16xf32>
    %63 = arith.truncf %62 : vector<16x16xf32> to vector<16x16xbf16>
    %cst_16 = arith.constant dense<0.000000e+00> : vector<16x8xf32>
    %64 = tpu.matmul %63, %50, %cst_16 {dimension_numbers = #tpu.dot_dimension_numbers<[1], [0], [0], [1], [0, 0, 1, 1], [], []>} : vector<16x16xbf16>, vector<16x8xbf16>, vector<16x8xf32> -> vector<16x8xf32>
    %65 = vector.extract_strided_slice %21 {offsets = [0, 16], sizes = [16, 8], strides = [1, 1]} : vector<16x32xf32> to vector<16x8xf32>
    %66 = arith.truncf %65 : vector<16x8xf32> to vector<16x8xbf16>
    %67 = vector.extract_strided_slice %22 {offsets = [0, 16], sizes = [16, 8], strides = [1, 1]} : vector<16x32xf32> to vector<16x8xf32>
    %68 = arith.truncf %67 : vector<16x8xf32> to vector<16x8xbf16>
    %69 = vector.extract_strided_slice %23 {offsets = [0, 16], sizes = [16, 8], strides = [1, 1]} : vector<16x32xf32> to vector<16x8xf32>
    %70 = arith.truncf %69 : vector<16x8xf32> to vector<16x8xbf16>
    "tpu.trace_start"() <{level = 10 : i32, message = "qe,ke->qk"}> : () -> ()
    %cst_17 = arith.constant dense<0.000000e+00> : vector<16x16xf32>
    %71 = tpu.matmul %66, %68, %cst_17 {dimension_numbers = #tpu.dot_dimension_numbers<[1], [1], [0], [0], [0, 0, 1, 0], [], []>} : vector<16x8xbf16>, vector<16x8xbf16>, vector<16x16xf32> -> vector<16x16xf32>
    "tpu.trace_stop"() : () -> ()
    %72 = arith.addf %71, %0 : vector<16x16xf32>
    %cst_18 = arith.constant dense<0xFF800000> : vector<16xf32>
    %73 = vector.multi_reduction <maximumf>, %72, %cst_18 [1] : vector<16x16xf32> to vector<16xf32>
    %74 = vector.shape_cast %73 : vector<16xf32> to vector<16x1xf32>
    %75 = vector.broadcast %74 : vector<16x1xf32> to vector<16x16xf32>
    %76 = arith.subf %72, %75 : vector<16x16xf32>
    %77 = math.exp %76 : vector<16x16xf32>
    %cst_19 = arith.constant dense<0.000000e+00> : vector<16xf32>
    %78 = vector.multi_reduction <add>, %77, %cst_19 [1] : vector<16x16xf32> to vector<16xf32>
    %79 = vector.shape_cast %78 : vector<16xf32> to vector<16x1xf32>
    %80 = tpu.reciprocal %79 {approx = true} : vector<16x1xf32> -> vector<16x1xf32>
    %81 = vector.broadcast %80 : vector<16x1xf32> to vector<16x16xf32>
    %82 = arith.mulf %77, %81 : vector<16x16xf32>
    %83 = arith.truncf %82 : vector<16x16xf32> to vector<16x16xbf16>
    %cst_20 = arith.constant dense<0.000000e+00> : vector<16x8xf32>
    %84 = tpu.matmul %83, %70, %cst_20 {dimension_numbers = #tpu.dot_dimension_numbers<[1], [0], [0], [1], [0, 0, 1, 1], [], []>} : vector<16x16xbf16>, vector<16x8xbf16>, vector<16x8xf32> -> vector<16x8xf32>
    %85 = vector.extract_strided_slice %21 {offsets = [0, 24], sizes = [16, 8], strides = [1, 1]} : vector<16x32xf32> to vector<16x8xf32>
    %86 = arith.truncf %85 : vector<16x8xf32> to vector<16x8xbf16>
    %87 = vector.extract_strided_slice %22 {offsets = [0, 24], sizes = [16, 8], strides = [1, 1]} : vector<16x32xf32> to vector<16x8xf32>
    %88 = arith.truncf %87 : vector<16x8xf32> to vector<16x8xbf16>
    %89 = vector.extract_strided_slice %23 {offsets = [0, 24], sizes = [16, 8], strides = [1, 1]} : vector<16x32xf32> to vector<16x8xf32>
    %90 = arith.truncf %89 : vector<16x8xf32> to vector<16x8xbf16>
    "tpu.trace_start"() <{level = 10 : i32, message = "qe,ke->qk"}> : () -> ()
    %cst_21 = arith.constant dense<0.000000e+00> : vector<16x16xf32>
    %91 = tpu.matmul %86, %88, %cst_21 {dimension_numbers = #tpu.dot_dimension_numbers<[1], [1], [0], [0], [0, 0, 1, 0], [], []>} : vector<16x8xbf16>, vector<16x8xbf16>, vector<16x16xf32> -> vector<16x16xf32>
    "tpu.trace_stop"() : () -> ()
    %92 = arith.addf %91, %0 : vector<16x16xf32>
    %cst_22 = arith.constant dense<0xFF800000> : vector<16xf32>
    %93 = vector.multi_reduction <maximumf>, %92, %cst_22 [1] : vector<16x16xf32> to vector<16xf32>
    %94 = vector.shape_cast %93 : vector<16xf32> to vector<16x1xf32>
    %95 = vector.broadcast %94 : vector<16x1xf32> to vector<16x16xf32>
    %96 = arith.subf %92, %95 : vector<16x16xf32>
    %97 = math.exp %96 : vector<16x16xf32>
    %cst_23 = arith.constant dense<0.000000e+00> : vector<16xf32>
    %98 = vector.multi_reduction <add>, %97, %cst_23 [1] : vector<16x16xf32> to vector<16xf32>
    %99 = vector.shape_cast %98 : vector<16xf32> to vector<16x1xf32>
    %100 = tpu.reciprocal %99 {approx = true} : vector<16x1xf32> -> vector<16x1xf32>
    %101 = vector.broadcast %100 : vector<16x1xf32> to vector<16x16xf32>
    %102 = arith.mulf %97, %101 : vector<16x16xf32>
    %103 = arith.truncf %102 : vector<16x16xf32> to vector<16x16xbf16>
    %cst_24 = arith.constant dense<0.000000e+00> : vector<16x8xf32>
    %104 = tpu.matmul %103, %90, %cst_24 {dimension_numbers = #tpu.dot_dimension_numbers<[1], [0], [0], [1], [0, 0, 1, 1], [], []>} : vector<16x16xbf16>, vector<16x8xbf16>, vector<16x8xf32> -> vector<16x8xf32>
    %105 = tpu.concatenate %44, %64, %84, %104 in 1 : vector<16x8xf32>, vector<16x8xf32>, vector<16x8xf32>, vector<16x8xf32> -> vector<16x32xf32>
    %106 = tpu.concatenate %42, %62, %82, %102 in 1 : vector<16x16xf32>, vector<16x16xf32>, vector<16x16xf32>, vector<16x16xf32> -> vector<16x64xf32>
    %107 = vector.extract_strided_slice %16 {offsets = [0, 96], sizes = [32, 32], strides = [1, 1]} : vector<32x128xbf16> to vector<32x32xbf16>
    %108 = arith.truncf %105 : vector<16x32xf32> to vector<16x32xbf16>
    %cst_25 = arith.constant dense<0.000000e+00> : vector<16x32xf32>
    %109 = tpu.matmul %108, %107, %cst_25 {dimension_numbers = #tpu.dot_dimension_numbers<[1], [0], [0], [1], [0, 0, 1, 1], [], []>} : vector<16x32xbf16>, vector<32x32xbf16>, vector<16x32xf32> -> vector<16x32xf32>
    %110 = vector.broadcast %24 : vector<1x32xf32> to vector<16x32xf32>
    %111 = arith.addf %109, %110 : vector<16x32xf32>
    %112 = arith.addf %111, %1 : vector<16x32xf32>
    %cst_26 = arith.constant dense<0.000000e+00> : vector<16xf32>
    %113 = vector.multi_reduction <add>, %112, %cst_26 [1] : vector<16x32xf32> to vector<16xf32>
    %114 = vector.shape_cast %113 : vector<16xf32> to vector<16x1xf32>
    %cst_27 = arith.constant 3.200000e+01 : f32
    %115 = vector.broadcast %cst_27 : f32 to vector<16x1xf32>
    %116 = arith.divf %114, %115 : vector<16x1xf32>
    %117 = vector.broadcast %116 : vector<16x1xf32> to vector<16x32xf32>
    %118 = arith.subf %112, %117 : vector<16x32xf32>
    %119 = arith.mulf %118, %118 : vector<16x32xf32>
    %cst_28 = arith.constant dense<0.000000e+00> : vector<16xf32>
    %120 = vector.multi_reduction <add>, %119, %cst_28 [1] : vector<16x32xf32> to vector<16xf32>
    %121 = vector.shape_cast %120 : vector<16xf32> to vector<16x1xf32>
    %cst_29 = arith.constant 3.200000e+01 : f32
    %122 = vector.broadcast %cst_29 : f32 to vector<16x1xf32>
    %123 = arith.divf %121, %122 : vector<16x1xf32>
    %124 = vector.broadcast %116 : vector<16x1xf32> to vector<16x32xf32>
    %125 = arith.subf %112, %124 : vector<16x32xf32>
    %cst_30 = arith.constant 9.99999974E-6 : f32
    %126 = vector.broadcast %cst_30 : f32 to vector<16x1xf32>
    %127 = arith.addf %123, %126 : vector<16x1xf32>
    %128 = math.rsqrt %127 : vector<16x1xf32>
    %129 = vector.broadcast %128 : vector<16x1xf32> to vector<16x32xf32>
    %130 = arith.mulf %125, %129 : vector<16x32xf32>
    %131 = vector.broadcast %9 : vector<1x32xf32> to vector<16x32xf32>
    %132 = arith.mulf %130, %131 : vector<16x32xf32>
    %133 = vector.broadcast %10 : vector<1x32xf32> to vector<16x32xf32>
    %134 = arith.addf %132, %133 : vector<16x32xf32>
    %c32 = arith.constant 32 : index
    %c0_31 = arith.constant 0 : index
    %135 = vector.load %arg3[%c32, %c0_31] : memref<160x128xbf16, #tpu.memory_space<vmem>>, vector<32x128xbf16>
    %136 = arith.truncf %134 : vector<16x32xf32> to vector<16x32xbf16>
    %cst_32 = arith.constant dense<0.000000e+00> : vector<16x128xf32>
    %137 = tpu.matmul %136, %135, %cst_32 {dimension_numbers = #tpu.dot_dimension_numbers<[1], [0], [0], [1], [0, 0, 1, 1], [], []>} : vector<16x32xbf16>, vector<32x128xbf16>, vector<16x128xf32> -> vector<16x128xf32>
    %138 = vector.broadcast %5 : vector<1x128xf32> to vector<16x128xf32>
    %139 = arith.addf %137, %138 : vector<16x128xf32>
    %140 = arith.truncf %2 : vector<16x32xf32> to vector<16x32xbf16>
    %cst_33 = arith.constant dense<0.000000e+00> : vector<16x128xf32>
    %141 = tpu.matmul %140, %135, %cst_33 {dimension_numbers = #tpu.dot_dimension_numbers<[1], [0], [0], [1], [0, 0, 1, 1], [], []>} : vector<16x32xbf16>, vector<32x128xbf16>, vector<16x128xf32> -> vector<16x128xf32>
    %142 = vector.broadcast %5 : vector<1x128xf32> to vector<16x128xf32>
    %143 = arith.addf %141, %142 : vector<16x128xf32>
    %144 = vector.extract_strided_slice %139 {offsets = [0, 0], sizes = [16, 32], strides = [1, 1]} : vector<16x128xf32> to vector<16x32xf32>
    %145 = vector.extract_strided_slice %143 {offsets = [0, 32], sizes = [16, 32], strides = [1, 1]} : vector<16x128xf32> to vector<16x32xf32>
    %146 = vector.extract_strided_slice %143 {offsets = [0, 64], sizes = [16, 32], strides = [1, 1]} : vector<16x128xf32> to vector<16x32xf32>
    %147 = vector.extract_strided_slice %5 {offsets = [0, 96], sizes = [1, 32], strides = [1, 1]} : vector<1x128xf32> to vector<1x32xf32>
    %148 = vector.extract_strided_slice %144 {offsets = [0, 0], sizes = [16, 8], strides = [1, 1]} : vector<16x32xf32> to vector<16x8xf32>
    %149 = arith.truncf %148 : vector<16x8xf32> to vector<16x8xbf16>
    %150 = vector.extract_strided_slice %145 {offsets = [0, 0], sizes = [16, 8], strides = [1, 1]} : vector<16x32xf32> to vector<16x8xf32>
    %151 = arith.truncf %150 : vector<16x8xf32> to vector<16x8xbf16>
    %152 = vector.extract_strided_slice %146 {offsets = [0, 0], sizes = [16, 8], strides = [1, 1]} : vector<16x32xf32> to vector<16x8xf32>
    %153 = arith.truncf %152 : vector<16x8xf32> to vector<16x8xbf16>
    "tpu.trace_start"() <{level = 10 : i32, message = "qe,ke->qk"}> : () -> ()
    %cst_34 = arith.constant dense<0.000000e+00> : vector<16x16xf32>
    %154 = tpu.matmul %149, %151, %cst_34 {dimension_numbers = #tpu.dot_dimension_numbers<[1], [1], [0], [0], [0, 0, 1, 0], [], []>} : vector<16x8xbf16>, vector<16x8xbf16>, vector<16x16xf32> -> vector<16x16xf32>
    "tpu.trace_stop"() : () -> ()
    %155 = arith.addf %154, %0 : vector<16x16xf32>
    %cst_35 = arith.constant dense<0xFF800000> : vector<16xf32>
    %156 = vector.multi_reduction <maximumf>, %155, %cst_35 [1] : vector<16x16xf32> to vector<16xf32>
    %157 = vector.shape_cast %156 : vector<16xf32> to vector<16x1xf32>
    %158 = vector.broadcast %157 : vector<16x1xf32> to vector<16x16xf32>
    %159 = arith.subf %155, %158 : vector<16x16xf32>
    %160 = math.exp %159 : vector<16x16xf32>
    %cst_36 = arith.constant dense<0.000000e+00> : vector<16xf32>
    %161 = vector.multi_reduction <add>, %160, %cst_36 [1] : vector<16x16xf32> to vector<16xf32>
    %162 = vector.shape_cast %161 : vector<16xf32> to vector<16x1xf32>
    %163 = tpu.reciprocal %162 {approx = true} : vector<16x1xf32> -> vector<16x1xf32>
    %164 = vector.broadcast %163 : vector<16x1xf32> to vector<16x16xf32>
    %165 = arith.mulf %160, %164 : vector<16x16xf32>
    %166 = arith.truncf %165 : vector<16x16xf32> to vector<16x16xbf16>
    %cst_37 = arith.constant dense<0.000000e+00> : vector<16x8xf32>
    %167 = tpu.matmul %166, %153, %cst_37 {dimension_numbers = #tpu.dot_dimension_numbers<[1], [0], [0], [1], [0, 0, 1, 1], [], []>} : vector<16x16xbf16>, vector<16x8xbf16>, vector<16x8xf32> -> vector<16x8xf32>
    %168 = vector.extract_strided_slice %144 {offsets = [0, 8], sizes = [16, 8], strides = [1, 1]} : vector<16x32xf32> to vector<16x8xf32>
    %169 = arith.truncf %168 : vector<16x8xf32> to vector<16x8xbf16>
    %170 = vector.extract_strided_slice %145 {offsets = [0, 8], sizes = [16, 8], strides = [1, 1]} : vector<16x32xf32> to vector<16x8xf32>
    %171 = arith.truncf %170 : vector<16x8xf32> to vector<16x8xbf16>
    %172 = vector.extract_strided_slice %146 {offsets = [0, 8], sizes = [16, 8], strides = [1, 1]} : vector<16x32xf32> to vector<16x8xf32>
    %173 = arith.truncf %172 : vector<16x8xf32> to vector<16x8xbf16>
    "tpu.trace_start"() <{level = 10 : i32, message = "qe,ke->qk"}> : () -> ()
    %cst_38 = arith.constant dense<0.000000e+00> : vector<16x16xf32>
    %174 = tpu.matmul %169, %171, %cst_38 {dimension_numbers = #tpu.dot_dimension_numbers<[1], [1], [0], [0], [0, 0, 1, 0], [], []>} : vector<16x8xbf16>, vector<16x8xbf16>, vector<16x16xf32> -> vector<16x16xf32>
    "tpu.trace_stop"() : () -> ()
    %175 = arith.addf %174, %0 : vector<16x16xf32>
    %cst_39 = arith.constant dense<0xFF800000> : vector<16xf32>
    %176 = vector.multi_reduction <maximumf>, %175, %cst_39 [1] : vector<16x16xf32> to vector<16xf32>
    %177 = vector.shape_cast %176 : vector<16xf32> to vector<16x1xf32>
    %178 = vector.broadcast %177 : vector<16x1xf32> to vector<16x16xf32>
    %179 = arith.subf %175, %178 : vector<16x16xf32>
    %180 = math.exp %179 : vector<16x16xf32>
    %cst_40 = arith.constant dense<0.000000e+00> : vector<16xf32>
    %181 = vector.multi_reduction <add>, %180, %cst_40 [1] : vector<16x16xf32> to vector<16xf32>
    %182 = vector.shape_cast %181 : vector<16xf32> to vector<16x1xf32>
    %183 = tpu.reciprocal %182 {approx = true} : vector<16x1xf32> -> vector<16x1xf32>
    %184 = vector.broadcast %183 : vector<16x1xf32> to vector<16x16xf32>
    %185 = arith.mulf %180, %184 : vector<16x16xf32>
    %186 = arith.truncf %185 : vector<16x16xf32> to vector<16x16xbf16>
    %cst_41 = arith.constant dense<0.000000e+00> : vector<16x8xf32>
    %187 = tpu.matmul %186, %173, %cst_41 {dimension_numbers = #tpu.dot_dimension_numbers<[1], [0], [0], [1], [0, 0, 1, 1], [], []>} : vector<16x16xbf16>, vector<16x8xbf16>, vector<16x8xf32> -> vector<16x8xf32>
    %188 = vector.extract_strided_slice %144 {offsets = [0, 16], sizes = [16, 8], strides = [1, 1]} : vector<16x32xf32> to vector<16x8xf32>
    %189 = arith.truncf %188 : vector<16x8xf32> to vector<16x8xbf16>
    %190 = vector.extract_strided_slice %145 {offsets = [0, 16], sizes = [16, 8], strides = [1, 1]} : vector<16x32xf32> to vector<16x8xf32>
    %191 = arith.truncf %190 : vector<16x8xf32> to vector<16x8xbf16>
    %192 = vector.extract_strided_slice %146 {offsets = [0, 16], sizes = [16, 8], strides = [1, 1]} : vector<16x32xf32> to vector<16x8xf32>
    %193 = arith.truncf %192 : vector<16x8xf32> to vector<16x8xbf16>
    "tpu.trace_start"() <{level = 10 : i32, message = "qe,ke->qk"}> : () -> ()
    %cst_42 = arith.constant dense<0.000000e+00> : vector<16x16xf32>
    %194 = tpu.matmul %189, %191, %cst_42 {dimension_numbers = #tpu.dot_dimension_numbers<[1], [1], [0], [0], [0, 0, 1, 0], [], []>} : vector<16x8xbf16>, vector<16x8xbf16>, vector<16x16xf32> -> vector<16x16xf32>
    "tpu.trace_stop"() : () -> ()
    %195 = arith.addf %194, %0 : vector<16x16xf32>
    %cst_43 = arith.constant dense<0xFF800000> : vector<16xf32>
    %196 = vector.multi_reduction <maximumf>, %195, %cst_43 [1] : vector<16x16xf32> to vector<16xf32>
    %197 = vector.shape_cast %196 : vector<16xf32> to vector<16x1xf32>
    %198 = vector.broadcast %197 : vector<16x1xf32> to vector<16x16xf32>
    %199 = arith.subf %195, %198 : vector<16x16xf32>
    %200 = math.exp %199 : vector<16x16xf32>
    %cst_44 = arith.constant dense<0.000000e+00> : vector<16xf32>
    %201 = vector.multi_reduction <add>, %200, %cst_44 [1] : vector<16x16xf32> to vector<16xf32>
    %202 = vector.shape_cast %201 : vector<16xf32> to vector<16x1xf32>
    %203 = tpu.reciprocal %202 {approx = true} : vector<16x1xf32> -> vector<16x1xf32>
    %204 = vector.broadcast %203 : vector<16x1xf32> to vector<16x16xf32>
    %205 = arith.mulf %200, %204 : vector<16x16xf32>
    %206 = arith.truncf %205 : vector<16x16xf32> to vector<16x16xbf16>
    %cst_45 = arith.constant dense<0.000000e+00> : vector<16x8xf32>
    %207 = tpu.matmul %206, %193, %cst_45 {dimension_numbers = #tpu.dot_dimension_numbers<[1], [0], [0], [1], [0, 0, 1, 1], [], []>} : vector<16x16xbf16>, vector<16x8xbf16>, vector<16x8xf32> -> vector<16x8xf32>
    %208 = vector.extract_strided_slice %144 {offsets = [0, 24], sizes = [16, 8], strides = [1, 1]} : vector<16x32xf32> to vector<16x8xf32>
    %209 = arith.truncf %208 : vector<16x8xf32> to vector<16x8xbf16>
    %210 = vector.extract_strided_slice %145 {offsets = [0, 24], sizes = [16, 8], strides = [1, 1]} : vector<16x32xf32> to vector<16x8xf32>
    %211 = arith.truncf %210 : vector<16x8xf32> to vector<16x8xbf16>
    %212 = vector.extract_strided_slice %146 {offsets = [0, 24], sizes = [16, 8], strides = [1, 1]} : vector<16x32xf32> to vector<16x8xf32>
    %213 = arith.truncf %212 : vector<16x8xf32> to vector<16x8xbf16>
    "tpu.trace_start"() <{level = 10 : i32, message = "qe,ke->qk"}> : () -> ()
    %cst_46 = arith.constant dense<0.000000e+00> : vector<16x16xf32>
    %214 = tpu.matmul %209, %211, %cst_46 {dimension_numbers = #tpu.dot_dimension_numbers<[1], [1], [0], [0], [0, 0, 1, 0], [], []>} : vector<16x8xbf16>, vector<16x8xbf16>, vector<16x16xf32> -> vector<16x16xf32>
    "tpu.trace_stop"() : () -> ()
    %215 = arith.addf %214, %0 : vector<16x16xf32>
    %cst_47 = arith.constant dense<0xFF800000> : vector<16xf32>
    %216 = vector.multi_reduction <maximumf>, %215, %cst_47 [1] : vector<16x16xf32> to vector<16xf32>
    %217 = vector.shape_cast %216 : vector<16xf32> to vector<16x1xf32>
    %218 = vector.broadcast %217 : vector<16x1xf32> to vector<16x16xf32>
    %219 = arith.subf %215, %218 : vector<16x16xf32>
    %220 = math.exp %219 : vector<16x16xf32>
    %cst_48 = arith.constant dense<0.000000e+00> : vector<16xf32>
    %221 = vector.multi_reduction <add>, %220, %cst_48 [1] : vector<16x16xf32> to vector<16xf32>
    %222 = vector.shape_cast %221 : vector<16xf32> to vector<16x1xf32>
    %223 = tpu.reciprocal %222 {approx = true} : vector<16x1xf32> -> vector<16x1xf32>
    %224 = vector.broadcast %223 : vector<16x1xf32> to vector<16x16xf32>
    %225 = arith.mulf %220, %224 : vector<16x16xf32>
    %226 = arith.truncf %225 : vector<16x16xf32> to vector<16x16xbf16>
    %cst_49 = arith.constant dense<0.000000e+00> : vector<16x8xf32>
    %227 = tpu.matmul %226, %213, %cst_49 {dimension_numbers = #tpu.dot_dimension_numbers<[1], [0], [0], [1], [0, 0, 1, 1], [], []>} : vector<16x16xbf16>, vector<16x8xbf16>, vector<16x8xf32> -> vector<16x8xf32>
    %228 = tpu.concatenate %167, %187, %207, %227 in 1 : vector<16x8xf32>, vector<16x8xf32>, vector<16x8xf32>, vector<16x8xf32> -> vector<16x32xf32>
    %229 = tpu.concatenate %165, %185, %205, %225 in 1 : vector<16x16xf32>, vector<16x16xf32>, vector<16x16xf32>, vector<16x16xf32> -> vector<16x64xf32>
    %230 = vector.extract_strided_slice %135 {offsets = [0, 96], sizes = [32, 32], strides = [1, 1]} : vector<32x128xbf16> to vector<32x32xbf16>
    %231 = arith.truncf %228 : vector<16x32xf32> to vector<16x32xbf16>
    %cst_50 = arith.constant dense<0.000000e+00> : vector<16x32xf32>
    %232 = tpu.matmul %231, %230, %cst_50 {dimension_numbers = #tpu.dot_dimension_numbers<[1], [0], [0], [1], [0, 0, 1, 1], [], []>} : vector<16x32xbf16>, vector<32x32xbf16>, vector<16x32xf32> -> vector<16x32xf32>
    %233 = vector.broadcast %147 : vector<1x32xf32> to vector<16x32xf32>
    %234 = arith.addf %232, %233 : vector<16x32xf32>
    %235 = arith.addf %234, %134 : vector<16x32xf32>
    %cst_51 = arith.constant dense<0.000000e+00> : vector<16xf32>
    %236 = vector.multi_reduction <add>, %235, %cst_51 [1] : vector<16x32xf32> to vector<16xf32>
    %237 = vector.shape_cast %236 : vector<16xf32> to vector<16x1xf32>
    %cst_52 = arith.constant 3.200000e+01 : f32
    %238 = vector.broadcast %cst_52 : f32 to vector<16x1xf32>
    %239 = arith.divf %237, %238 : vector<16x1xf32>
    %240 = vector.broadcast %239 : vector<16x1xf32> to vector<16x32xf32>
    %241 = arith.subf %235, %240 : vector<16x32xf32>
    %242 = arith.mulf %241, %241 : vector<16x32xf32>
    %cst_53 = arith.constant dense<0.000000e+00> : vector<16xf32>
    %243 = vector.multi_reduction <add>, %242, %cst_53 [1] : vector<16x32xf32> to vector<16xf32>
    %244 = vector.shape_cast %243 : vector<16xf32> to vector<16x1xf32>
    %cst_54 = arith.constant 3.200000e+01 : f32
    %245 = vector.broadcast %cst_54 : f32 to vector<16x1xf32>
    %246 = arith.divf %244, %245 : vector<16x1xf32>
    %247 = vector.broadcast %239 : vector<16x1xf32> to vector<16x32xf32>
    %248 = arith.subf %235, %247 : vector<16x32xf32>
    %cst_55 = arith.constant 9.99999974E-6 : f32
    %249 = vector.broadcast %cst_55 : f32 to vector<16x1xf32>
    %250 = arith.addf %246, %249 : vector<16x1xf32>
    %251 = math.rsqrt %250 : vector<16x1xf32>
    %252 = vector.broadcast %251 : vector<16x1xf32> to vector<16x32xf32>
    %253 = arith.mulf %248, %252 : vector<16x32xf32>
    %254 = vector.broadcast %11 : vector<1x32xf32> to vector<16x32xf32>
    %255 = arith.mulf %253, %254 : vector<16x32xf32>
    %256 = vector.broadcast %12 : vector<1x32xf32> to vector<16x32xf32>
    %257 = arith.addf %255, %256 : vector<16x32xf32>
    %c64 = arith.constant 64 : index
    %c0_56 = arith.constant 0 : index
    %258 = vector.load %arg3[%c64, %c0_56] : memref<160x128xbf16, #tpu.memory_space<vmem>>, vector<32x64xbf16>
    %c96 = arith.constant 96 : index
    %c0_57 = arith.constant 0 : index
    %259 = vector.load %arg3[%c96, %c0_57] : memref<160x128xbf16, #tpu.memory_space<vmem>>, vector<64x32xbf16>
    %260 = arith.truncf %257 : vector<16x32xf32> to vector<16x32xbf16>
    %cst_58 = arith.constant dense<0.000000e+00> : vector<16x64xf32>
    %261 = tpu.matmul %260, %258, %cst_58 {dimension_numbers = #tpu.dot_dimension_numbers<[1], [0], [0], [1], [0, 0, 1, 1], [], []>} : vector<16x32xbf16>, vector<32x64xbf16>, vector<16x64xf32> -> vector<16x64xf32>
    %262 = vector.broadcast %13 : vector<1x64xf32> to vector<16x64xf32>
    %263 = arith.addf %261, %262 : vector<16x64xf32>
    %cst_59 = arith.constant 0.000000e+00 : f32
    %264 = vector.broadcast %cst_59 : f32 to vector<16x64xf32>
    %265 = arith.maximumf %263, %264 : vector<16x64xf32>
    %266 = arith.truncf %265 : vector<16x64xf32> to vector<16x64xbf16>
    %cst_60 = arith.constant dense<0.000000e+00> : vector<16x32xf32>
    %267 = tpu.matmul %266, %259, %cst_60 {dimension_numbers = #tpu.dot_dimension_numbers<[1], [0], [0], [1], [0, 0, 1, 1], [], []>} : vector<16x64xbf16>, vector<64x32xbf16>, vector<16x32xf32> -> vector<16x32xf32>
    %268 = vector.broadcast %14 : vector<1x32xf32> to vector<16x32xf32>
    %269 = arith.addf %267, %268 : vector<16x32xf32>
    %270 = arith.addf %269, %257 : vector<16x32xf32>
    %cst_61 = arith.constant dense<0.000000e+00> : vector<16xf32>
    %271 = vector.multi_reduction <add>, %270, %cst_61 [1] : vector<16x32xf32> to vector<16xf32>
    %272 = vector.shape_cast %271 : vector<16xf32> to vector<16x1xf32>
    %cst_62 = arith.constant 3.200000e+01 : f32
    %273 = vector.broadcast %cst_62 : f32 to vector<16x1xf32>
    %274 = arith.divf %272, %273 : vector<16x1xf32>
    %275 = vector.broadcast %274 : vector<16x1xf32> to vector<16x32xf32>
    %276 = arith.subf %270, %275 : vector<16x32xf32>
    %277 = arith.mulf %276, %276 : vector<16x32xf32>
    %cst_63 = arith.constant dense<0.000000e+00> : vector<16xf32>
    %278 = vector.multi_reduction <add>, %277, %cst_63 [1] : vector<16x32xf32> to vector<16xf32>
    %279 = vector.shape_cast %278 : vector<16xf32> to vector<16x1xf32>
    %cst_64 = arith.constant 3.200000e+01 : f32
    %280 = vector.broadcast %cst_64 : f32 to vector<16x1xf32>
    %281 = arith.divf %279, %280 : vector<16x1xf32>
    %282 = vector.broadcast %274 : vector<16x1xf32> to vector<16x32xf32>
    %283 = arith.subf %270, %282 : vector<16x32xf32>
    %cst_65 = arith.constant 9.99999974E-6 : f32
    %284 = vector.broadcast %cst_65 : f32 to vector<16x1xf32>
    %285 = arith.addf %281, %284 : vector<16x1xf32>
    %286 = math.rsqrt %285 : vector<16x1xf32>
    %287 = vector.broadcast %286 : vector<16x1xf32> to vector<16x32xf32>
    %288 = arith.mulf %283, %287 : vector<16x32xf32>
    %289 = vector.broadcast %15 : vector<1x32xf32> to vector<16x32xf32>
    %290 = arith.mulf %288, %289 : vector<16x32xf32>
    %291 = vector.broadcast %8 : vector<1x32xf32> to vector<16x32xf32>
    %292 = arith.addf %290, %291 : vector<16x32xf32>
    %c0_66 = arith.constant 0 : index
    %c0_67 = arith.constant 0 : index
    %293 = vector.load %arg5[%c0_66, %c0_67] : memref<16x32xf32, #tpu.memory_space<vmem>>, vector<16x32xf32>
    tpu.vector_store %arg5[%c0_66, %c0_67], %292 {strides = array<i32>} : memref<16x32xf32, #tpu.memory_space<vmem>>, vector<16x32xf32>,
    %294 = tpu.concatenate %106, %229 in 1 : vector<16x64xf32>, vector<16x64xf32> -> vector<16x128xf32>
    %c0_68 = arith.constant 0 : index
    %c0_69 = arith.constant 0 : index
    %295 = vector.load %arg6[%c0_68, %c0_69] : memref<16x128xf32, #tpu.memory_space<vmem>>, vector<16x128xf32>
    tpu.vector_store %arg6[%c0_68, %c0_69], %294 {strides = array<i32>} : memref<16x128xf32, #tpu.memory_space<vmem>>, vector<16x128xf32>,
    return
  }
}

</mosaic_0001>

<llo_original>
// kernel: decoder_layer.1
$region0: #{decoder_layer.1}
  #allocation0 [shape = 'u32[]', space=smem, size = 0x4, offset = 0x4, fixed_abs, tag = 'smem constant byte address 0x4 - core index']
  #allocation1 [shape = 'u32[144,128]{1,0:T(1,128)}', space=vmem, size = 0x12000, scoped, tag = 'internal scratch']
  %s0 = inlined_call_operand.vmem [shape: f32[16,16], index: 0, kind: input, shape index: {}]
  %s1 = inlined_call_operand.vmem [shape: f32[16,32], index: 1, kind: input, shape index: {}]
  %s2 = inlined_call_operand.vmem [shape: f32[16,32], index: 2, kind: input, shape index: {}]
  %s3 = inlined_call_operand.vmem [shape: bf16[160,128], index: 3, kind: input, shape index: {}]
  %s4 = inlined_call_operand.vmem [shape: f32[8,128], index: 4, kind: input, shape index: {}]
  %s5 = inlined_call_operand.hbm [shape: f32[16,32], index: 5, kind: output, shape index: {0}]
  %s6 = inlined_call_operand.vmem [shape: f32[16,128], index: 6, kind: output, shape index: {1}]
  %7 = xla_tuple %s5, %s6
  %s8 = sld [smem:[#allocation0]]
  $region38: #{decoder_layer.1} parent=0
    _
  %s10 = ssub.s32 1, %s8
  %s11 = scalar_select 0, %s10, %s8
  $region1: #{decoder_layer.1} parent=0
    #allocation2 [shape = 'u8[8192]{0}', space=vmem, size = 0x2000, scoped, tag = 'output window, operand 0, single buffered']
    #allocation3 [shape = 's32[1]{0}', space=sflag, size = 0x4, scoped, tag = 'scoped memory for decoder_layer.1']
    %12 = vsyncpa [#allocation3], 0
    // Predicated region
    $region2: #{decoder_layer.1} parent=1 // pred_check
      _
    $region3: #{decoder_layer.1} parent=1 // pred_check_branch
      %14 = sbr.rel (0) target = $region5
    $region4: #{decoder_layer.1} parent=1 // pred_region
      _
    $region5: #{decoder_layer.1} parent=1 // pred_fallthru
      _
    // Predicated region
    $region6: #{decoder_layer.1} parent=1 // pred_check
      _
    $region7: #{decoder_layer.1} parent=1 // pred_check_branch
      %16 = sbr.rel (0) target = $region9
    $region8: #{decoder_layer.1} parent=1 // pred_region
      _
    $region9: #{decoder_layer.1} parent=1 // pred_fallthru
      _
    // Predicated region
    $region10: #{decoder_layer.1} parent=1 // pred_check
      _
    $region11: #{decoder_layer.1} parent=1 // pred_check_branch
      %18 = sbr.rel (0) target = $region13
    $region12: #{decoder_layer.1} parent=1 // pred_region
      _
    $region13: #{decoder_layer.1} parent=1 // pred_fallthru
      _
    // Predicated region
    $region14: #{decoder_layer.1} parent=1 // pred_check
      _
    $region15: #{decoder_layer.1} parent=1 // pred_check_branch
      %20 = sbr.rel (0) target = $region17
    $region16: #{decoder_layer.1} parent=1 // pred_region
      _
    $region17: #{decoder_layer.1} parent=1 // pred_fallthru
      _
    // Predicated region
    $region18: #{decoder_layer.1} parent=1 // pred_check
      _
    $region19: #{decoder_layer.1} parent=1 // pred_check_branch
      %22 = sbr.rel (0) target = $region21
    $region20: #{decoder_layer.1} parent=1 // pred_region
      _
    $region21: #{decoder_layer.1} parent=1 // pred_fallthru
      _
    %v24 = vld [vmem:[%s0] sm:$0xff]
    %v25 = vld [vmem:[%s0 + $0x8] sm:$0xff]
    %v26 = vld [vmem:[%s1] sm:$0xff]
    %v27 = vld [vmem:[%s1 + $0x8] sm:$0xff]
    %v28 = vld [vmem:[%s2] sm:$0xff]
    %v29 = vld [vmem:[%s2 + $0x8] sm:$0xff]
    %v30 = vld [vmem:[%s4] sm:$0xff]
    %v31 = vld [vmem:[%s3] sm:$0xf]
    %v32 = vld [vmem:[%s3 + $0x4] sm:$0xf]
    %v33 = vld [vmem:[%s3 + $0x8] sm:$0xf]
    %v34 = vld [vmem:[%s3 + $0xc] sm:$0xf]
    %v35 = vpack.c.bf16 %v27, %v26
    %v36 = vlaneseq
    %v37 = vshrl.u32 %v36, 7
    %v38 = vsub.s32 0, %v37
    %v39 = vrot.slane %v30, %v38
    %v44 = vunpack.c.l.b16 %v31
    %v45 = vunpack.c.l.b16 %v32
    %v46 = vunpack.c.l.b16 %v33
    %v47 = vunpack.c.l.b16 %v34
    %v48 = vpack.c.b16 %v45, %v44
    %v49 = vpack.c.b16 %v47, %v46
    %vm52 = vcmask 261120
    %v54 = vsel %vm52, %v35, 0
    %56 = vmatprep.subr.bf16.mxu0 0
    %57 = vmatpush1.bf16.msra.mxu0 0
    %58 = vmatprep.subr.bf16.mxu0 0
    %59 = vmatpush1.bf16.msra.mxu0 0
    %60 = vmatprep.subr.bf16.mxu0 0
    %61 = vmatpush1.bf16.msra.mxu0 0
    %62 = vmatprep.subr.bf16.mxu0 0
    %63 = vmatpush1.bf16.msra.mxu0 0
    %64 = vmatprep.subr.bf16.mxu0 0
    %65 = vmatpush1.bf16.msra.mxu0 0
    %66 = vmatprep.subr.bf16.mxu0 0
    %67 = vmatpush1.bf16.msra.mxu0 0
    %68 = vmatprep.subr.bf16.mxu0 0
    %69 = vmatpush1.bf16.msra.mxu0 %v49
    %70 = vmatprep.subr.bf16.mxu0 0
    %71 = vmatpush1.bf16.msra.mxu0 %v48
    %72 = vmatprep.subr.bf16.mxu0 0
    %73 = vmatpush2.bf16.msra.mxu0 0
    %74 = vmatprep.subr.bf16.mxu0 0
    %75 = vmatpush2.bf16.msra.mxu0 0
    %76 = vmatprep.subr.bf16.mxu0 0
    %77 = vmatpush2.bf16.msra.mxu0 0
    %78 = vmatprep.subr.bf16.mxu0 0
    %79 = vmatpush2.bf16.msra.mxu0 0
    %80 = vmatprep.subr.bf16.mxu0 0
    %81 = vmatpush2.bf16.msra.mxu0 0
    %82 = vmatprep.subr.bf16.mxu0 0
    %83 = vmatpush2.bf16.msra.mxu0 0
    %84 = vmatprep.subr.bf16.mxu0 0
    %85 = vmatpush2.bf16.msra.mxu0 0
    %86 = vmatprep.subr.bf16.mxu0 0
    %87 = vmatpush2.bf16.msra.mxu0 0
    %88 = vmatprep.mubr.bf16.mxu0 0
    %89 = vmatmul.mubr.bf16.gmra.mxu0 %v54
    %v90 = vpop.f32.mrf.mxu0
    %v91 = vadd.f32 %v39, %v90
    %v92 = vpop.f32.mrf.mxu0
    %v93 = vpop.f32.mrf.mxu0
    %v94 = vadd.f32 %v39, %v93
    %v95 = vpop.f32.mrf.mxu0
    %96 = vdwg.mxu0
    %v97 = vpack.c.bf16 %v94, %v91
    %99 = vrot.lane.b32.xlu0 %v97, 96
    %v100 = vpop.permute.xlu0 %99
    %vm101 = vcmask 64512
    %v103 = vsel %vm101, %v97, 0
    %v106 = vsel %vm101, %v100, 0
    %108 = vmatprep.subr.bf16.mxu0 0
    %109 = vmatpush1.bf16.xpose.msra.mxu0 0
    %110 = vmatprep.subr.bf16.mxu0 0
    %111 = vmatpush1.bf16.xpose.msra.mxu0 0
    %112 = vmatprep.subr.bf16.mxu0 0
    %113 = vmatpush1.bf16.xpose.msra.mxu0 0
    %114 = vmatprep.subr.bf16.mxu0 0
    %115 = vmatpush1.bf16.xpose.msra.mxu0 0
    %116 = vmatprep.subr.bf16.mxu0 0
    %117 = vmatpush1.bf16.xpose.msra.mxu0 0
    %118 = vmatprep.subr.bf16.mxu0 0
    %119 = vmatpush1.bf16.xpose.msra.mxu0 0
    %120 = vmatprep.subr.bf16.mxu0 0
    %121 = vmatpush1.bf16.xpose.msra.mxu0 0
    %122 = vmatprep.subr.bf16.mxu0 0
    %123 = vmatpush1.bf16.xpose.msra.mxu0 %v106
    %124 = vmatprep.subr.bf16.mxu0 0
    %125 = vmatpush2.bf16.xpose.msra.mxu0 0
    %126 = vmatprep.subr.bf16.mxu0 0
    %127 = vmatpush2.bf16.xpose.msra.mxu0 0
    %128 = vmatprep.subr.bf16.mxu0 0
    %129 = vmatpush2.bf16.xpose.msra.mxu0 0
    %130 = vmatprep.subr.bf16.mxu0 0
    %131 = vmatpush2.bf16.xpose.msra.mxu0 0
    %132 = vmatprep.subr.bf16.mxu0 0
    %133 = vmatpush2.bf16.xpose.msra.mxu0 0
    %134 = vmatprep.subr.bf16.mxu0 0
    %135 = vmatpush2.bf16.xpose.msra.mxu0 0
    %136 = vmatprep.subr.bf16.mxu0 0
    %137 = vmatpush2.bf16.xpose.msra.mxu0 0
    %138 = vmatprep.subr.bf16.mxu0 0
    %139 = vmatpush2.bf16.xpose.msra.mxu0 0
    %140 = vmatprep.mubr.bf16.mxu0 0
    %141 = vmatmul.mubr.bf16.gmra.mxu0 %v103
    %v142 = vpop.f32.mrf.mxu0
    %v143 = vadd.f32 %v24, %v142
    %v144 = vpop.f32.mrf.mxu0
    %v145 = vpop.f32.mrf.mxu0
    %v146 = vadd.f32 %v25, %v145
    %v147 = vpop.f32.mrf.mxu0
    %148 = vdwg.mxu0
    %vm149 = vcmask 130048
    %v150 = vsel %vm149, %v143, -inf
    %151 = vmax.xlane.f32.xlu0 %v150
    %v152 = vpop.xlane.xlu0 %151
    %v153 = vsel %vm149, %v146, -inf
    %154 = vmax.xlane.f32.xlu0 %v153
    %v155 = vpop.xlane.xlu0 %154
    %v156 = vsub.f32 %v143, %v152
    %v157 = vsub.f32 %v146, %v155
    %v158 = vmul.f32 %v156, 1.442695
    %v159 = vpow.pop %v158
    %v160 = vmul.f32 %v157, 1.442695
    %v161 = vpow.pop %v160
    %v162 = vsel %vm149, %v159, 0.0
    %163 = vadd.xlane.f32.xlu0 %v162
    %v164 = vpop.xlane.xlu0 %163
    %v165 = vsel %vm149, %v161, 0.0
    %166 = vadd.xlane.f32.xlu0 %v165
    %v167 = vpop.xlane.xlu0 %166
    %v168 = vrcp.pop %v164
    %v169 = vrcp.pop %v167
    %v170 = vmul.f32 %v159, %v168
    %v171 = vmul.f32 %v161, %v169
    %v172 = vpack.c.bf16 %v171, %v170
    %173 = vrot.lane.b32.xlu0 %v97, 64
    %v174 = vpop.permute.xlu0 %173
    %v177 = vsel %vm149, %v172, 0
    %179 = vmatprep.subr.bf16.mxu0 0
    %180 = vmatpush1.bf16.msra.mxu0 0
    %181 = vmatprep.subr.bf16.mxu0 0
    %182 = vmatpush1.bf16.msra.mxu0 0
    %183 = vmatprep.subr.bf16.mxu0 0
    %184 = vmatpush1.bf16.msra.mxu0 0
    %185 = vmatprep.subr.bf16.mxu0 0
    %186 = vmatpush1.bf16.msra.mxu0 0
    %187 = vmatprep.subr.bf16.mxu0 0
    %188 = vmatpush1.bf16.msra.mxu0 0
    %189 = vmatprep.subr.bf16.mxu0 0
    %190 = vmatpush1.bf16.msra.mxu0 0
    %191 = vmatprep.subr.bf16.mxu0 0
    %192 = vmatpush1.bf16.msra.mxu0 0
    %193 = vmatprep.subr.bf16.mxu0 0
    %194 = vmatpush1.bf16.msra.mxu0 %v174
    %195 = vmatprep.subr.bf16.mxu0 0
    %196 = vmatpush2.bf16.msra.mxu0 0
    %197 = vmatprep.subr.bf16.mxu0 0
    %198 = vmatpush2.bf16.msra.mxu0 0
    %199 = vmatprep.subr.bf16.mxu0 0
    %200 = vmatpush2.bf16.msra.mxu0 0
    %201 = vmatprep.subr.bf16.mxu0 0
    %202 = vmatpush2.bf16.msra.mxu0 0
    %203 = vmatprep.subr.bf16.mxu0 0
    %204 = vmatpush2.bf16.msra.mxu0 0
    %205 = vmatprep.subr.bf16.mxu0 0
    %206 = vmatpush2.bf16.msra.mxu0 0
    %207 = vmatprep.subr.bf16.mxu0 0
    %208 = vmatpush2.bf16.msra.mxu0 0
    %209 = vmatprep.subr.bf16.mxu0 0
    %210 = vmatpush2.bf16.msra.mxu0 0
    %211 = vmatprep.mubr.bf16.mxu0 0
    %212 = vmatmul.mubr.bf16.gmra.mxu0 %v177
    %v213 = vpop.f32.mrf.mxu0
    %v214 = vadd.f32 0.0, %v213
    %v215 = vpop.f32.mrf.mxu0
    %v216 = vpop.f32.mrf.mxu0
    %v217 = vadd.f32 0.0, %v216
    %v218 = vpop.f32.mrf.mxu0
    %219 = vdwg.mxu0
    %220 = vrot.lane.b32.xlu0 %v97, 120
    %v221 = vpop.permute.xlu0 %220
    %222 = vrot.lane.b32.xlu0 %v97, 88
    %v223 = vpop.permute.xlu0 %222
    %v225 = vsel %vm101, %v221, 0
    %v228 = vsel %vm101, %v223, 0
    %230 = vmatprep.subr.bf16.mxu0 0
    %231 = vmatpush1.bf16.xpose.msra.mxu0 0
    %232 = vmatprep.subr.bf16.mxu0 0
    %233 = vmatpush1.bf16.xpose.msra.mxu0 0
    %234 = vmatprep.subr.bf16.mxu0 0
    %235 = vmatpush1.bf16.xpose.msra.mxu0 0
    %236 = vmatprep.subr.bf16.mxu0 0
    %237 = vmatpush1.bf16.xpose.msra.mxu0 0
    %238 = vmatprep.subr.bf16.mxu0 0
    %239 = vmatpush1.bf16.xpose.msra.mxu0 0
    %240 = vmatprep.subr.bf16.mxu0 0
    %241 = vmatpush1.bf16.xpose.msra.mxu0 0
    %242 = vmatprep.subr.bf16.mxu0 0
    %243 = vmatpush1.bf16.xpose.msra.mxu0 0
    %244 = vmatprep.subr.bf16.mxu0 0
    %245 = vmatpush1.bf16.xpose.msra.mxu0 %v228
    %246 = vmatprep.subr.bf16.mxu0 0
    %247 = vmatpush2.bf16.xpose.msra.mxu0 0
    %248 = vmatprep.subr.bf16.mxu0 0
    %249 = vmatpush2.bf16.xpose.msra.mxu0 0
    %250 = vmatprep.subr.bf16.mxu0 0
    %251 = vmatpush2.bf16.xpose.msra.mxu0 0
    %252 = vmatprep.subr.bf16.mxu0 0
    %253 = vmatpush2.bf16.xpose.msra.mxu0 0
    %254 = vmatprep.subr.bf16.mxu0 0
    %255 = vmatpush2.bf16.xpose.msra.mxu0 0
    %256 = vmatprep.subr.bf16.mxu0 0
    %257 = vmatpush2.bf16.xpose.msra.mxu0 0
    %258 = vmatprep.subr.bf16.mxu0 0
    %259 = vmatpush2.bf16.xpose.msra.mxu0 0
    %260 = vmatprep.subr.bf16.mxu0 0
    %261 = vmatpush2.bf16.xpose.msra.mxu0 0
    %262 = vmatprep.mubr.bf16.mxu0 0
    %263 = vmatmul.mubr.bf16.gmra.mxu0 %v225
    %v264 = vpop.f32.mrf.mxu0
    %v265 = vadd.f32 %v24, %v264
    %v266 = vpop.f32.mrf.mxu0
    %v267 = vpop.f32.mrf.mxu0
    %v268 = vadd.f32 %v25, %v267
    %v269 = vpop.f32.mrf.mxu0
    %270 = vdwg.mxu0
    %v271 = vsel %vm149, %v265, -inf
    %272 = vmax.xlane.f32.xlu0 %v271
    %v273 = vpop.xlane.xlu0 %272
    %v274 = vsel %vm149, %v268, -inf
    %275 = vmax.xlane.f32.xlu0 %v274
    %v276 = vpop.xlane.xlu0 %275
    %v277 = vsub.f32 %v265, %v273
    %v278 = vsub.f32 %v268, %v276
    %v279 = vmul.f32 %v277, 1.442695
    %v280 = vpow.pop %v279
    %v281 = vmul.f32 %v278, 1.442695
    %v282 = vpow.pop %v281
    %v283 = vsel %vm149, %v280, 0.0
    %284 = vadd.xlane.f32.xlu0 %v283
    %v285 = vpop.xlane.xlu0 %284
    %v286 = vsel %vm149, %v282, 0.0
    %287 = vadd.xlane.f32.xlu0 %v286
    %v288 = vpop.xlane.xlu0 %287
    %v289 = vrcp.pop %v285
    %v290 = vrcp.pop %v288
    %v291 = vmul.f32 %v280, %v289
    %v292 = vmul.f32 %v282, %v290
    %v293 = vpack.c.bf16 %v292, %v291
    %294 = vrot.lane.b32.xlu0 %v97, 56
    %v295 = vpop.permute.xlu0 %294
    %v298 = vsel %vm149, %v293, 0
    %300 = vmatprep.subr.bf16.mxu0 0
    %301 = vmatpush1.bf16.msra.mxu0 0
    %302 = vmatprep.subr.bf16.mxu0 0
    %303 = vmatpush1.bf16.msra.mxu0 0
    %304 = vmatprep.subr.bf16.mxu0 0
    %305 = vmatpush1.bf16.msra.mxu0 0
    %306 = vmatprep.subr.bf16.mxu0 0
    %307 = vmatpush1.bf16.msra.mxu0 0
    %308 = vmatprep.subr.bf16.mxu0 0
    %309 = vmatpush1.bf16.msra.mxu0 0
    %310 = vmatprep.subr.bf16.mxu0 0
    %311 = vmatpush1.bf16.msra.mxu0 0
    %312 = vmatprep.subr.bf16.mxu0 0
    %313 = vmatpush1.bf16.msra.mxu0 0
    %314 = vmatprep.subr.bf16.mxu0 0
    %315 = vmatpush1.bf16.msra.mxu0 %v295
    %316 = vmatprep.subr.bf16.mxu0 0
    %317 = vmatpush2.bf16.msra.mxu0 0
    %318 = vmatprep.subr.bf16.mxu0 0
    %319 = vmatpush2.bf16.msra.mxu0 0
    %320 = vmatprep.subr.bf16.mxu0 0
    %321 = vmatpush2.bf16.msra.mxu0 0
    %322 = vmatprep.subr.bf16.mxu0 0
    %323 = vmatpush2.bf16.msra.mxu0 0
    %324 = vmatprep.subr.bf16.mxu0 0
    %325 = vmatpush2.bf16.msra.mxu0 0
    %326 = vmatprep.subr.bf16.mxu0 0
    %327 = vmatpush2.bf16.msra.mxu0 0
    %328 = vmatprep.subr.bf16.mxu0 0
    %329 = vmatpush2.bf16.msra.mxu0 0
    %330 = vmatprep.subr.bf16.mxu0 0
    %331 = vmatpush2.bf16.msra.mxu0 0
    %332 = vmatprep.mubr.bf16.mxu0 0
    %333 = vmatmul.mubr.bf16.gmra.mxu0 %v298
    %v334 = vpop.f32.mrf.mxu0
    %v335 = vadd.f32 0.0, %v334
    %v336 = vpop.f32.mrf.mxu0
    %v337 = vpop.f32.mrf.mxu0
    %v338 = vadd.f32 0.0, %v337
    %v339 = vpop.f32.mrf.mxu0
    %340 = vdwg.mxu0
    %341 = vrot.lane.b32.xlu0 %v97, 112
    %v342 = vpop.permute.xlu0 %341
    %343 = vrot.lane.b32.xlu0 %v97, 80
    %v344 = vpop.permute.xlu0 %343
    %v346 = vsel %vm101, %v342, 0
    %v349 = vsel %vm101, %v344, 0
    %351 = vmatprep.subr.bf16.mxu0 0
    %352 = vmatpush1.bf16.xpose.msra.mxu0 0
    %353 = vmatprep.subr.bf16.mxu0 0
    %354 = vmatpush1.bf16.xpose.msra.mxu0 0
    %355 = vmatprep.subr.bf16.mxu0 0
    %356 = vmatpush1.bf16.xpose.msra.mxu0 0
    %357 = vmatprep.subr.bf16.mxu0 0
    %358 = vmatpush1.bf16.xpose.msra.mxu0 0
    %359 = vmatprep.subr.bf16.mxu0 0
    %360 = vmatpush1.bf16.xpose.msra.mxu0 0
    %361 = vmatprep.subr.bf16.mxu0 0
    %362 = vmatpush1.bf16.xpose.msra.mxu0 0
    %363 = vmatprep.subr.bf16.mxu0 0
    %364 = vmatpush1.bf16.xpose.msra.mxu0 0
    %365 = vmatprep.subr.bf16.mxu0 0
    %366 = vmatpush1.bf16.xpose.msra.mxu0 %v349
    %367 = vmatprep.subr.bf16.mxu0 0
    %368 = vmatpush2.bf16.xpose.msra.mxu0 0
    %369 = vmatprep.subr.bf16.mxu0 0
    %370 = vmatpush2.bf16.xpose.msra.mxu0 0
    %371 = vmatprep.subr.bf16.mxu0 0
    %372 = vmatpush2.bf16.xpose.msra.mxu0 0
    %373 = vmatprep.subr.bf16.mxu0 0
    %374 = vmatpush2.bf16.xpose.msra.mxu0 0
    %375 = vmatprep.subr.bf16.mxu0 0
    %376 = vmatpush2.bf16.xpose.msra.mxu0 0
    %377 = vmatprep.subr.bf16.mxu0 0
    %378 = vmatpush2.bf16.xpose.msra.mxu0 0
    %379 = vmatprep.subr.bf16.mxu0 0
    %380 = vmatpush2.bf16.xpose.msra.mxu0 0
    %381 = vmatprep.subr.bf16.mxu0 0
    %382 = vmatpush2.bf16.xpose.msra.mxu0 0
    %383 = vmatprep.mubr.bf16.mxu0 0
    %384 = vmatmul.mubr.bf16.gmra.mxu0 %v346
    %v385 = vpop.f32.mrf.mxu0
    %v386 = vadd.f32 %v24, %v385
    %v387 = vpop.f32.mrf.mxu0
    %v388 = vpop.f32.mrf.mxu0
    %v389 = vadd.f32 %v25, %v388
    %v390 = vpop.f32.mrf.mxu0
    %391 = vdwg.mxu0
    %v392 = vsel %vm149, %v386, -inf
    %393 = vmax.xlane.f32.xlu0 %v392
    %v394 = vpop.xlane.xlu0 %393
    %v395 = vsel %vm149, %v389, -inf
    %396 = vmax.xlane.f32.xlu0 %v395
    %v397 = vpop.xlane.xlu0 %396
    %v398 = vsub.f32 %v386, %v394
    %v399 = vsub.f32 %v389, %v397
    %v400 = vmul.f32 %v398, 1.442695
    %v401 = vpow.pop %v400
    %v402 = vmul.f32 %v399, 1.442695
    %v403 = vpow.pop %v402
    %v404 = vsel %vm149, %v401, 0.0
    %405 = vadd.xlane.f32.xlu0 %v404
    %v406 = vpop.xlane.xlu0 %405
    %v407 = vsel %vm149, %v403, 0.0
    %408 = vadd.xlane.f32.xlu0 %v407
    %v409 = vpop.xlane.xlu0 %408
    %v410 = vrcp.pop %v406
    %v411 = vrcp.pop %v409
    %v412 = vmul.f32 %v401, %v410
    %v413 = vmul.f32 %v403, %v411
    %v414 = vpack.c.bf16 %v413, %v412
    %415 = vrot.lane.b32.xlu0 %v97, 48
    %v416 = vpop.permute.xlu0 %415
    %v419 = vsel %vm149, %v414, 0
    %421 = vmatprep.subr.bf16.mxu0 0
    %422 = vmatpush1.bf16.msra.mxu0 0
    %423 = vmatprep.subr.bf16.mxu0 0
    %424 = vmatpush1.bf16.msra.mxu0 0
    %425 = vmatprep.subr.bf16.mxu0 0
    %426 = vmatpush1.bf16.msra.mxu0 0
    %427 = vmatprep.subr.bf16.mxu0 0
    %428 = vmatpush1.bf16.msra.mxu0 0
    %429 = vmatprep.subr.bf16.mxu0 0
    %430 = vmatpush1.bf16.msra.mxu0 0
    %431 = vmatprep.subr.bf16.mxu0 0
    %432 = vmatpush1.bf16.msra.mxu0 0
    %433 = vmatprep.subr.bf16.mxu0 0
    %434 = vmatpush1.bf16.msra.mxu0 0
    %435 = vmatprep.subr.bf16.mxu0 0
    %436 = vmatpush1.bf16.msra.mxu0 %v416
    %437 = vmatprep.subr.bf16.mxu0 0
    %438 = vmatpush2.bf16.msra.mxu0 0
    %439 = vmatprep.subr.bf16.mxu0 0
    %440 = vmatpush2.bf16.msra.mxu0 0
    %441 = vmatprep.subr.bf16.mxu0 0
    %442 = vmatpush2.bf16.msra.mxu0 0
    %443 = vmatprep.subr.bf16.mxu0 0
    %444 = vmatpush2.bf16.msra.mxu0 0
    %445 = vmatprep.subr.bf16.mxu0 0
    %446 = vmatpush2.bf16.msra.mxu0 0
    %447 = vmatprep.subr.bf16.mxu0 0
    %448 = vmatpush2.bf16.msra.mxu0 0
    %449 = vmatprep.subr.bf16.mxu0 0
    %450 = vmatpush2.bf16.msra.mxu0 0
    %451 = vmatprep.subr.bf16.mxu0 0
    %452 = vmatpush2.bf16.msra.mxu0 0
    %453 = vmatprep.mubr.bf16.mxu0 0
    %454 = vmatmul.mubr.bf16.gmra.mxu0 %v419
    %v455 = vpop.f32.mrf.mxu0
    %v456 = vadd.f32 0.0, %v455
    %v457 = vpop.f32.mrf.mxu0
    %v458 = vpop.f32.mrf.mxu0
    %v459 = vadd.f32 0.0, %v458
    %v460 = vpop.f32.mrf.mxu0
    %461 = vdwg.mxu0
    %462 = vrot.lane.b32.xlu0 %v97, 104
    %v463 = vpop.permute.xlu0 %462
    %464 = vrot.lane.b32.xlu0 %v97, 72
    %v465 = vpop.permute.xlu0 %464
    %v467 = vsel %vm101, %v463, 0
    %v470 = vsel %vm101, %v465, 0
    %472 = vmatprep.subr.bf16.mxu0 0
    %473 = vmatpush1.bf16.xpose.msra.mxu0 0
    %474 = vmatprep.subr.bf16.mxu0 0
    %475 = vmatpush1.bf16.xpose.msra.mxu0 0
    %476 = vmatprep.subr.bf16.mxu0 0
    %477 = vmatpush1.bf16.xpose.msra.mxu0 0
    %478 = vmatprep.subr.bf16.mxu0 0
    %479 = vmatpush1.bf16.xpose.msra.mxu0 0
    %480 = vmatprep.subr.bf16.mxu0 0
    %481 = vmatpush1.bf16.xpose.msra.mxu0 0
    %482 = vmatprep.subr.bf16.mxu0 0
    %483 = vmatpush1.bf16.xpose.msra.mxu0 0
    %484 = vmatprep.subr.bf16.mxu0 0
    %485 = vmatpush1.bf16.xpose.msra.mxu0 0
    %486 = vmatprep.subr.bf16.mxu0 0
    %487 = vmatpush1.bf16.xpose.msra.mxu0 %v470
    %488 = vmatprep.subr.bf16.mxu0 0
    %489 = vmatpush2.bf16.xpose.msra.mxu0 0
    %490 = vmatprep.subr.bf16.mxu0 0
    %491 = vmatpush2.bf16.xpose.msra.mxu0 0
    %492 = vmatprep.subr.bf16.mxu0 0
    %493 = vmatpush2.bf16.xpose.msra.mxu0 0
    %494 = vmatprep.subr.bf16.mxu0 0
    %495 = vmatpush2.bf16.xpose.msra.mxu0 0
    %496 = vmatprep.subr.bf16.mxu0 0
    %497 = vmatpush2.bf16.xpose.msra.mxu0 0
    %498 = vmatprep.subr.bf16.mxu0 0
    %499 = vmatpush2.bf16.xpose.msra.mxu0 0
    %500 = vmatprep.subr.bf16.mxu0 0
    %501 = vmatpush2.bf16.xpose.msra.mxu0 0
    %502 = vmatprep.subr.bf16.mxu0 0
    %503 = vmatpush2.bf16.xpose.msra.mxu0 0
    %504 = vmatprep.mubr.bf16.mxu0 0
    %505 = vmatmul.mubr.bf16.gmra.mxu0 %v467
    %v506 = vpop.f32.mrf.mxu0
    %v507 = vadd.f32 %v24, %v506
    %v508 = vpop.f32.mrf.mxu0
    %v509 = vpop.f32.mrf.mxu0
    %v510 = vadd.f32 %v25, %v509
    %v511 = vpop.f32.mrf.mxu0
    %512 = vdwg.mxu0
    %v513 = vsel %vm149, %v507, -inf
    %514 = vmax.xlane.f32.xlu0 %v513
    %v515 = vpop.xlane.xlu0 %514
    %v516 = vsel %vm149, %v510, -inf
    %517 = vmax.xlane.f32.xlu0 %v516
    %v518 = vpop.xlane.xlu0 %517
    %v519 = vsub.f32 %v507, %v515
    %v520 = vsub.f32 %v510, %v518
    %v521 = vmul.f32 %v519, 1.442695
    %v522 = vpow.pop %v521
    %v523 = vmul.f32 %v520, 1.442695
    %v524 = vpow.pop %v523
    %v525 = vsel %vm149, %v522, 0.0
    %526 = vadd.xlane.f32.xlu0 %v525
    %v527 = vpop.xlane.xlu0 %526
    %v528 = vsel %vm149, %v524, 0.0
    %529 = vadd.xlane.f32.xlu0 %v528
    %v530 = vpop.xlane.xlu0 %529
    %v531 = vrcp.pop %v527
    %v532 = vrcp.pop %v530
    %v533 = vmul.f32 %v522, %v531
    %v534 = vmul.f32 %v524, %v532
    %v535 = vpack.c.bf16 %v534, %v533
    %536 = vrot.lane.b32.xlu0 %v97, 40
    %v537 = vpop.permute.xlu0 %536
    %v540 = vsel %vm149, %v535, 0
    %542 = vmatprep.subr.bf16.mxu0 0
    %543 = vmatpush1.bf16.msra.mxu0 0
    %544 = vmatprep.subr.bf16.mxu0 0
    %545 = vmatpush1.bf16.msra.mxu0 0
    %546 = vmatprep.subr.bf16.mxu0 0
    %547 = vmatpush1.bf16.msra.mxu0 0
    %548 = vmatprep.subr.bf16.mxu0 0
    %549 = vmatpush1.bf16.msra.mxu0 0
    %550 = vmatprep.subr.bf16.mxu0 0
    %551 = vmatpush1.bf16.msra.mxu0 0
    %552 = vmatprep.subr.bf16.mxu0 0
    %553 = vmatpush1.bf16.msra.mxu0 0
    %554 = vmatprep.subr.bf16.mxu0 0
    %555 = vmatpush1.bf16.msra.mxu0 0
    %556 = vmatprep.subr.bf16.mxu0 0
    %557 = vmatpush1.bf16.msra.mxu0 %v537
    %558 = vmatprep.subr.bf16.mxu0 0
    %559 = vmatpush2.bf16.msra.mxu0 0
    %560 = vmatprep.subr.bf16.mxu0 0
    %561 = vmatpush2.bf16.msra.mxu0 0
    %562 = vmatprep.subr.bf16.mxu0 0
    %563 = vmatpush2.bf16.msra.mxu0 0
    %564 = vmatprep.subr.bf16.mxu0 0
    %565 = vmatpush2.bf16.msra.mxu0 0
    %566 = vmatprep.subr.bf16.mxu0 0
    %567 = vmatpush2.bf16.msra.mxu0 0
    %568 = vmatprep.subr.bf16.mxu0 0
    %569 = vmatpush2.bf16.msra.mxu0 0
    %570 = vmatprep.subr.bf16.mxu0 0
    %571 = vmatpush2.bf16.msra.mxu0 0
    %572 = vmatprep.subr.bf16.mxu0 0
    %573 = vmatpush2.bf16.msra.mxu0 0
    %574 = vmatprep.mubr.bf16.mxu0 0
    %575 = vmatmul.mubr.bf16.gmra.mxu0 %v540
    %v576 = vpop.f32.mrf.mxu0
    %v577 = vadd.f32 0.0, %v576
    %v578 = vpop.f32.mrf.mxu0
    %v579 = vpop.f32.mrf.mxu0
    %v580 = vadd.f32 0.0, %v579
    %v581 = vpop.f32.mrf.mxu0
    %582 = vdwg.mxu0
    %585 = vrot.lane.b32.xlu0 %v335, 8
    %v586 = vpop.permute.xlu0 %585
    %587 = vrot.lane.b32.xlu0 %v338, 8
    %v588 = vpop.permute.xlu0 %587
    %593 = vrot.lane.b32.xlu0 %v456, 16
    %v594 = vpop.permute.xlu0 %593
    %595 = vrot.lane.b32.xlu0 %v459, 16
    %v596 = vpop.permute.xlu0 %595
    %601 = vrot.lane.b32.xlu0 %v577, 24
    %v602 = vpop.permute.xlu0 %601
    %603 = vrot.lane.b32.xlu0 %v580, 24
    %v604 = vpop.permute.xlu0 %603
    %v607 = vsel %vm101, %v214, %v586
    %v608 = vsel %vm101, %v217, %v588
    %v609 = vsel %vm149, %v607, %v594
    %v610 = vsel %vm149, %v608, %v596
    %vm611 = vcmask 195584
    %v612 = vsel %vm611, %v609, %v602
    %v613 = vsel %vm611, %v610, %v604
    %616 = vrot.lane.b32.xlu0 %v291, 16
    %v617 = vpop.permute.xlu0 %616
    %618 = vrot.lane.b32.xlu0 %v292, 16
    %v619 = vpop.permute.xlu0 %618
    %624 = vrot.lane.b32.xlu0 %v412, 32
    %v625 = vpop.permute.xlu0 %624
    %626 = vrot.lane.b32.xlu0 %v413, 32
    %v627 = vpop.permute.xlu0 %626
    %632 = vrot.lane.b32.xlu0 %v533, 48
    %v633 = vpop.permute.xlu0 %632
    %634 = vrot.lane.b32.xlu0 %v534, 48
    %v635 = vpop.permute.xlu0 %634
    %v638 = vsel %vm149, %v170, %v617
    %v639 = vsel %vm149, %v171, %v619
    %v640 = vsel %vm52, %v638, %v625
    %v641 = vsel %vm52, %v639, %v627
    %vm642 = vcmask 392192
    %v643 = vsel %vm642, %v640, %v633
    %v644 = vsel %vm642, %v641, %v635
    %v645 = vpack.c.bf16 %v613, %v612
    %646 = vrot.lane.b32.xlu0 %v48, 32
    %v647 = vpop.permute.xlu0 %646
    %648 = vrot.lane.b32.xlu0 %v49, 32
    %v649 = vpop.permute.xlu0 %648
    %653 = vrot.lane.b32.xlu0 %v39, 32
    %v654 = vpop.permute.xlu0 %653
    %v657 = vsel %vm52, %v645, 0
    %659 = vmatprep.subr.bf16.mxu0 0
    %660 = vmatpush1.bf16.msra.mxu0 0
    %661 = vmatprep.subr.bf16.mxu0 0
    %662 = vmatpush1.bf16.msra.mxu0 0
    %663 = vmatprep.subr.bf16.mxu0 0
    %664 = vmatpush1.bf16.msra.mxu0 0
    %665 = vmatprep.subr.bf16.mxu0 0
    %666 = vmatpush1.bf16.msra.mxu0 0
    %667 = vmatprep.subr.bf16.mxu0 0
    %668 = vmatpush1.bf16.msra.mxu0 0
    %669 = vmatprep.subr.bf16.mxu0 0
    %670 = vmatpush1.bf16.msra.mxu0 0
    %671 = vmatprep.subr.bf16.mxu0 0
    %672 = vmatpush1.bf16.msra.mxu0 %v649
    %673 = vmatprep.subr.bf16.mxu0 0
    %674 = vmatpush1.bf16.msra.mxu0 %v647
    %675 = vmatprep.subr.bf16.mxu0 0
    %676 = vmatpush2.bf16.msra.mxu0 0
    %677 = vmatprep.subr.bf16.mxu0 0
    %678 = vmatpush2.bf16.msra.mxu0 0
    %679 = vmatprep.subr.bf16.mxu0 0
    %680 = vmatpush2.bf16.msra.mxu0 0
    %681 = vmatprep.subr.bf16.mxu0 0
    %682 = vmatpush2.bf16.msra.mxu0 0
    %683 = vmatprep.subr.bf16.mxu0 0
    %684 = vmatpush2.bf16.msra.mxu0 0
    %685 = vmatprep.subr.bf16.mxu0 0
    %686 = vmatpush2.bf16.msra.mxu0 0
    %687 = vmatprep.subr.bf16.mxu0 0
    %688 = vmatpush2.bf16.msra.mxu0 0
    %689 = vmatprep.subr.bf16.mxu0 0
    %690 = vmatpush2.bf16.msra.mxu0 0
    %691 = vmatprep.mubr.bf16.mxu0 0
    %692 = vmatmul.mubr.bf16.gmra.mxu0 %v657
    %v693 = vpop.f32.mrf.mxu0
    %v694 = vadd.f32 %v654, %v693
    %v695 = vpop.f32.mrf.mxu0
    %v696 = vpop.f32.mrf.mxu0
    %v697 = vadd.f32 %v654, %v696
    %v698 = vpop.f32.mrf.mxu0
    %699 = vdwg.mxu0
    %v700 = vadd.f32 %v694, %v26
    %v701 = vadd.f32 %v697, %v27
    %v702 = vsel %vm52, %v700, 0.0
    %703 = vadd.xlane.f32.xlu0 %v702
    %v704 = vpop.xlane.xlu0 %703
    %v705 = vsel %vm52, %v701, 0.0
    %706 = vadd.xlane.f32.xlu0 %v705
    %v707 = vpop.xlane.xlu0 %706
    %v708 = vrcp.pop 32.0
    %v709 = vmul.f32 %v704, %v708
    %v710 = vmul.f32 %v707, %v708
    %v711 = vsub.f32 %v700, %v709
    %v712 = vsub.f32 %v701, %v710
    %v713 = vmul.f32 %v711, %v711
    %v714 = vmul.f32 %v712, %v712
    %v715 = vsel %vm52, %v713, 0.0
    %716 = vadd.xlane.f32.xlu0 %v715
    %v717 = vpop.xlane.xlu0 %716
    %v718 = vsel %vm52, %v714, 0.0
    %719 = vadd.xlane.f32.xlu0 %v718
    %v720 = vpop.xlane.xlu0 %719
    %v721 = vmul.f32 %v717, %v708
    %v722 = vmul.f32 %v720, %v708
    %v723 = vadd.f32 %v721, 1e-05
    %v724 = vadd.f32 %v722, 1e-05
    %v725 = vrsqrt.pop %v723
    %v726 = vrsqrt.pop %v724
    %v727 = vmul.f32 %v711, %v725
    %v728 = vmul.f32 %v712, %v726
    %v729 = vlaneseq
    %v730 = vshrl.u32 %v729, 7
    %v731 = vsub.s32 2, %v730
    %v732 = vrot.slane %v30, %v731
    %v733 = vmul.f32 %v727, %v732
    %v734 = vmul.f32 %v728, %v732
    %736 = vrot.lane.b32.xlu0 %v732, 96
    %v737 = vpop.permute.xlu0 %736
    %v739 = vadd.f32 %v733, %v737
    %v740 = vadd.f32 %v734, %v737
    %v741 = vld [vmem:[%s3 + $0x10] sm:$0xf]
    %v742 = vld [vmem:[%s3 + $0x14] sm:$0xf]
    %v743 = vld [vmem:[%s3 + $0x18] sm:$0xf]
    %v744 = vld [vmem:[%s3 + $0x1c] sm:$0xf]
    %v745 = vpack.c.bf16 %v740, %v739
    %v746 = vlaneseq
    %v747 = vshrl.u32 %v746, 7
    %v748 = vsub.s32 1, %v747
    %v749 = vrot.slane %v30, %v748
    %v754 = vunpack.c.l.b16 %v741
    %v755 = vunpack.c.l.b16 %v742
    %v756 = vunpack.c.l.b16 %v743
    %v757 = vunpack.c.l.b16 %v744
    %v758 = vpack.c.b16 %v755, %v754
    %v759 = vpack.c.b16 %v757, %v756
    %v763 = vsel %vm52, %v745, 0
    %765 = vmatprep.subr.bf16.mxu0 0
    %766 = vmatpush1.bf16.msra.mxu0 0
    %767 = vmatprep.subr.bf16.mxu0 0
    %768 = vmatpush1.bf16.msra.mxu0 0
    %769 = vmatprep.subr.bf16.mxu0 0
    %770 = vmatpush1.bf16.msra.mxu0 0
    %771 = vmatprep.subr.bf16.mxu0 0
    %772 = vmatpush1.bf16.msra.mxu0 0
    %773 = vmatprep.subr.bf16.mxu0 0
    %774 = vmatpush1.bf16.msra.mxu0 0
    %775 = vmatprep.subr.bf16.mxu0 0
    %776 = vmatpush1.bf16.msra.mxu0 0
    %777 = vmatprep.subr.bf16.mxu0 0
    %778 = vmatpush1.bf16.msra.mxu0 %v759
    %779 = vmatprep.subr.bf16.mxu0 0
    %780 = vmatpush1.bf16.msra.mxu0 %v758
    %781 = vmatprep.subr.bf16.mxu0 0
    %782 = vmatpush2.bf16.msra.mxu0 0
    %783 = vmatprep.subr.bf16.mxu0 0
    %784 = vmatpush2.bf16.msra.mxu0 0
    %785 = vmatprep.subr.bf16.mxu0 0
    %786 = vmatpush2.bf16.msra.mxu0 0
    %787 = vmatprep.subr.bf16.mxu0 0
    %788 = vmatpush2.bf16.msra.mxu0 0
    %789 = vmatprep.subr.bf16.mxu0 0
    %790 = vmatpush2.bf16.msra.mxu0 0
    %791 = vmatprep.subr.bf16.mxu0 0
    %792 = vmatpush2.bf16.msra.mxu0 0
    %793 = vmatprep.subr.bf16.mxu0 0
    %794 = vmatpush2.bf16.msra.mxu0 0
    %795 = vmatprep.subr.bf16.mxu0 0
    %796 = vmatpush2.bf16.msra.mxu0 0
    %797 = vmatprep.mubr.bf16.mxu0 0
    %798 = vmatmul.mubr.bf16.gmra.mxu0 %v763
    %v799 = vpop.f32.mrf.mxu0
    %v800 = vadd.f32 %v749, %v799
    %v801 = vpop.f32.mrf.mxu0
    %v802 = vpop.f32.mrf.mxu0
    %v803 = vadd.f32 %v749, %v802
    %v804 = vpop.f32.mrf.mxu0
    %805 = vdwg.mxu0
    %v806 = vpack.c.bf16 %v29, %v28
    %v808 = vsel %vm52, %v806, 0
    %810 = vmatprep.subr.bf16.mxu0 0
    %811 = vmatpush1.bf16.msra.mxu0 0
    %812 = vmatprep.subr.bf16.mxu0 0
    %813 = vmatpush1.bf16.msra.mxu0 0
    %814 = vmatprep.subr.bf16.mxu0 0
    %815 = vmatpush1.bf16.msra.mxu0 0
    %816 = vmatprep.subr.bf16.mxu0 0
    %817 = vmatpush1.bf16.msra.mxu0 0
    %818 = vmatprep.subr.bf16.mxu0 0
    %819 = vmatpush1.bf16.msra.mxu0 0
    %820 = vmatprep.subr.bf16.mxu0 0
    %821 = vmatpush1.bf16.msra.mxu0 0
    %822 = vmatprep.subr.bf16.mxu0 0
    %823 = vmatpush1.bf16.msra.mxu0 %v759
    %824 = vmatprep.subr.bf16.mxu0 0
    %825 = vmatpush1.bf16.msra.mxu0 %v758
    %826 = vmatprep.subr.bf16.mxu0 0
    %827 = vmatpush2.bf16.msra.mxu0 0
    %828 = vmatprep.subr.bf16.mxu0 0
    %829 = vmatpush2.bf16.msra.mxu0 0
    %830 = vmatprep.subr.bf16.mxu0 0
    %831 = vmatpush2.bf16.msra.mxu0 0
    %832 = vmatprep.subr.bf16.mxu0 0
    %833 = vmatpush2.bf16.msra.mxu0 0
    %834 = vmatprep.subr.bf16.mxu0 0
    %835 = vmatpush2.bf16.msra.mxu0 0
    %836 = vmatprep.subr.bf16.mxu0 0
    %837 = vmatpush2.bf16.msra.mxu0 0
    %838 = vmatprep.subr.bf16.mxu0 0
    %839 = vmatpush2.bf16.msra.mxu0 0
    %840 = vmatprep.subr.bf16.mxu0 0
    %841 = vmatpush2.bf16.msra.mxu0 0
    %842 = vmatprep.mubr.bf16.mxu0 0
    %843 = vmatmul.mubr.bf16.gmra.mxu0 %v808
    %v844 = vpop.f32.mrf.mxu0
    %v845 = vadd.f32 %v749, %v844
    %v846 = vpop.f32.mrf.mxu0
    %v847 = vpop.f32.mrf.mxu0
    %v848 = vadd.f32 %v749, %v847
    %v849 = vpop.f32.mrf.mxu0
    %850 = vdwg.mxu0
    %v851 = vpack.c.bf16 %v803, %v800
    %v852 = vpack.c.bf16 %v848, %v845
    %854 = vrot.lane.b32.xlu0 %v852, 96
    %v855 = vpop.permute.xlu0 %854
    %v857 = vsel %vm101, %v851, 0
    %v860 = vsel %vm101, %v855, 0
    %862 = vmatprep.subr.bf16.mxu0 0
    %863 = vmatpush1.bf16.xpose.msra.mxu0 0
    %864 = vmatprep.subr.bf16.mxu0 0
    %865 = vmatpush1.bf16.xpose.msra.mxu0 0
    %866 = vmatprep.subr.bf16.mxu0 0
    %867 = vmatpush1.bf16.xpose.msra.mxu0 0
    %868 = vmatprep.subr.bf16.mxu0 0
    %869 = vmatpush1.bf16.xpose.msra.mxu0 0
    %870 = vmatprep.subr.bf16.mxu0 0
    %871 = vmatpush1.bf16.xpose.msra.mxu0 0
    %872 = vmatprep.subr.bf16.mxu0 0
    %873 = vmatpush1.bf16.xpose.msra.mxu0 0
    %874 = vmatprep.subr.bf16.mxu0 0
    %875 = vmatpush1.bf16.xpose.msra.mxu0 0
    %876 = vmatprep.subr.bf16.mxu0 0
    %877 = vmatpush1.bf16.xpose.msra.mxu0 %v860
    %878 = vmatprep.subr.bf16.mxu0 0
    %879 = vmatpush2.bf16.xpose.msra.mxu0 0
    %880 = vmatprep.subr.bf16.mxu0 0
    %881 = vmatpush2.bf16.xpose.msra.mxu0 0
    %882 = vmatprep.subr.bf16.mxu0 0
    %883 = vmatpush2.bf16.xpose.msra.mxu0 0
    %884 = vmatprep.subr.bf16.mxu0 0
    %885 = vmatpush2.bf16.xpose.msra.mxu0 0
    %886 = vmatprep.subr.bf16.mxu0 0
    %887 = vmatpush2.bf16.xpose.msra.mxu0 0
    %888 = vmatprep.subr.bf16.mxu0 0
    %889 = vmatpush2.bf16.xpose.msra.mxu0 0
    %890 = vmatprep.subr.bf16.mxu0 0
    %891 = vmatpush2.bf16.xpose.msra.mxu0 0
    %892 = vmatprep.subr.bf16.mxu0 0
    %893 = vmatpush2.bf16.xpose.msra.mxu0 0
    %894 = vmatprep.mubr.bf16.mxu0 0
    %895 = vmatmul.mubr.bf16.gmra.mxu0 %v857
    %v896 = vpop.f32.mrf.mxu0
    %v897 = vadd.f32 %v24, %v896
    %v898 = vpop.f32.mrf.mxu0
    %v899 = vpop.f32.mrf.mxu0
    %v900 = vadd.f32 %v25, %v899
    %v901 = vpop.f32.mrf.mxu0
    %902 = vdwg.mxu0
    %v903 = vsel %vm149, %v897, -inf
    %904 = vmax.xlane.f32.xlu0 %v903
    %v905 = vpop.xlane.xlu0 %904
    %v906 = vsel %vm149, %v900, -inf
    %907 = vmax.xlane.f32.xlu0 %v906
    %v908 = vpop.xlane.xlu0 %907
    %v909 = vsub.f32 %v897, %v905
    %v910 = vsub.f32 %v900, %v908
    %v911 = vmul.f32 %v909, 1.442695
    %v912 = vpow.pop %v911
    %v913 = vmul.f32 %v910, 1.442695
    %v914 = vpow.pop %v913
    %v915 = vsel %vm149, %v912, 0.0
    %916 = vadd.xlane.f32.xlu0 %v915
    %v917 = vpop.xlane.xlu0 %916
    %v918 = vsel %vm149, %v914, 0.0
    %919 = vadd.xlane.f32.xlu0 %v918
    %v920 = vpop.xlane.xlu0 %919
    %v921 = vrcp.pop %v917
    %v922 = vrcp.pop %v920
    %v923 = vmul.f32 %v912, %v921
    %v924 = vmul.f32 %v914, %v922
    %v925 = vpack.c.bf16 %v924, %v923
    %926 = vrot.lane.b32.xlu0 %v852, 64
    %v927 = vpop.permute.xlu0 %926
    %v930 = vsel %vm149, %v925, 0
    %932 = vmatprep.subr.bf16.mxu0 0
    %933 = vmatpush1.bf16.msra.mxu0 0
    %934 = vmatprep.subr.bf16.mxu0 0
    %935 = vmatpush1.bf16.msra.mxu0 0
    %936 = vmatprep.subr.bf16.mxu0 0
    %937 = vmatpush1.bf16.msra.mxu0 0
    %938 = vmatprep.subr.bf16.mxu0 0
    %939 = vmatpush1.bf16.msra.mxu0 0
    %940 = vmatprep.subr.bf16.mxu0 0
    %941 = vmatpush1.bf16.msra.mxu0 0
    %942 = vmatprep.subr.bf16.mxu0 0
    %943 = vmatpush1.bf16.msra.mxu0 0
    %944 = vmatprep.subr.bf16.mxu0 0
    %945 = vmatpush1.bf16.msra.mxu0 0
    %946 = vmatprep.subr.bf16.mxu0 0
    %947 = vmatpush1.bf16.msra.mxu0 %v927
    %948 = vmatprep.subr.bf16.mxu0 0
    %949 = vmatpush2.bf16.msra.mxu0 0
    %950 = vmatprep.subr.bf16.mxu0 0
    %951 = vmatpush2.bf16.msra.mxu0 0
    %952 = vmatprep.subr.bf16.mxu0 0
    %953 = vmatpush2.bf16.msra.mxu0 0
    %954 = vmatprep.subr.bf16.mxu0 0
    %955 = vmatpush2.bf16.msra.mxu0 0
    %956 = vmatprep.subr.bf16.mxu0 0
    %957 = vmatpush2.bf16.msra.mxu0 0
    %958 = vmatprep.subr.bf16.mxu0 0
    %959 = vmatpush2.bf16.msra.mxu0 0
    %960 = vmatprep.subr.bf16.mxu0 0
    %961 = vmatpush2.bf16.msra.mxu0 0
    %962 = vmatprep.subr.bf16.mxu0 0
    %963 = vmatpush2.bf16.msra.mxu0 0
    %964 = vmatprep.mubr.bf16.mxu0 0
    %965 = vmatmul.mubr.bf16.gmra.mxu0 %v930
    %v966 = vpop.f32.mrf.mxu0
    %v967 = vadd.f32 0.0, %v966
    %v968 = vpop.f32.mrf.mxu0
    %v969 = vpop.f32.mrf.mxu0
    %v970 = vadd.f32 0.0, %v969
    %v971 = vpop.f32.mrf.mxu0
    %972 = vdwg.mxu0
    %974 = vrot.lane.b32.xlu0 %v851, 120
    %v975 = vpop.permute.xlu0 %974
    %976 = vrot.lane.b32.xlu0 %v852, 88
    %v977 = vpop.permute.xlu0 %976
    %v979 = vsel %vm101, %v975, 0
    %v982 = vsel %vm101, %v977, 0
    %984 = vmatprep.subr.bf16.mxu0 0
    %985 = vmatpush1.bf16.xpose.msra.mxu0 0
    %986 = vmatprep.subr.bf16.mxu0 0
    %987 = vmatpush1.bf16.xpose.msra.mxu0 0
    %988 = vmatprep.subr.bf16.mxu0 0
    %989 = vmatpush1.bf16.xpose.msra.mxu0 0
    %990 = vmatprep.subr.bf16.mxu0 0
    %991 = vmatpush1.bf16.xpose.msra.mxu0 0
    %992 = vmatprep.subr.bf16.mxu0 0
    %993 = vmatpush1.bf16.xpose.msra.mxu0 0
    %994 = vmatprep.subr.bf16.mxu0 0
    %995 = vmatpush1.bf16.xpose.msra.mxu0 0
    %996 = vmatprep.subr.bf16.mxu0 0
    %997 = vmatpush1.bf16.xpose.msra.mxu0 0
    %998 = vmatprep.subr.bf16.mxu0 0
    %999 = vmatpush1.bf16.xpose.msra.mxu0 %v982
    %1000 = vmatprep.subr.bf16.mxu0 0
    %1001 = vmatpush2.bf16.xpose.msra.mxu0 0
    %1002 = vmatprep.subr.bf16.mxu0 0
    %1003 = vmatpush2.bf16.xpose.msra.mxu0 0
    %1004 = vmatprep.subr.bf16.mxu0 0
    %1005 = vmatpush2.bf16.xpose.msra.mxu0 0
    %1006 = vmatprep.subr.bf16.mxu0 0
    %1007 = vmatpush2.bf16.xpose.msra.mxu0 0
    %1008 = vmatprep.subr.bf16.mxu0 0
    %1009 = vmatpush2.bf16.xpose.msra.mxu0 0
    %1010 = vmatprep.subr.bf16.mxu0 0
    %1011 = vmatpush2.bf16.xpose.msra.mxu0 0
    %1012 = vmatprep.subr.bf16.mxu0 0
    %1013 = vmatpush2.bf16.xpose.msra.mxu0 0
    %1014 = vmatprep.subr.bf16.mxu0 0
    %1015 = vmatpush2.bf16.xpose.msra.mxu0 0
    %1016 = vmatprep.mubr.bf16.mxu0 0
    %1017 = vmatmul.mubr.bf16.gmra.mxu0 %v979
    %v1018 = vpop.f32.mrf.mxu0
    %v1019 = vadd.f32 %v24, %v1018
    %v1020 = vpop.f32.mrf.mxu0
    %v1021 = vpop.f32.mrf.mxu0
    %v1022 = vadd.f32 %v25, %v1021
    %v1023 = vpop.f32.mrf.mxu0
    %1024 = vdwg.mxu0
    %v1025 = vsel %vm149, %v1019, -inf
    %1026 = vmax.xlane.f32.xlu0 %v1025
    %v1027 = vpop.xlane.xlu0 %1026
    %v1028 = vsel %vm149, %v1022, -inf
    %1029 = vmax.xlane.f32.xlu0 %v1028
    %v1030 = vpop.xlane.xlu0 %1029
    %v1031 = vsub.f32 %v1019, %v1027
    %v1032 = vsub.f32 %v1022, %v1030
    %v1033 = vmul.f32 %v1031, 1.442695
    %v1034 = vpow.pop %v1033
    %v1035 = vmul.f32 %v1032, 1.442695
    %v1036 = vpow.pop %v1035
    %v1037 = vsel %vm149, %v1034, 0.0
    %1038 = vadd.xlane.f32.xlu0 %v1037
    %v1039 = vpop.xlane.xlu0 %1038
    %v1040 = vsel %vm149, %v1036, 0.0
    %1041 = vadd.xlane.f32.xlu0 %v1040
    %v1042 = vpop.xlane.xlu0 %1041
    %v1043 = vrcp.pop %v1039
    %v1044 = vrcp.pop %v1042
    %v1045 = vmul.f32 %v1034, %v1043
    %v1046 = vmul.f32 %v1036, %v1044
    %v1047 = vpack.c.bf16 %v1046, %v1045
    %1048 = vrot.lane.b32.xlu0 %v852, 56
    %v1049 = vpop.permute.xlu0 %1048
    %v1052 = vsel %vm149, %v1047, 0
    %1054 = vmatprep.subr.bf16.mxu0 0
    %1055 = vmatpush1.bf16.msra.mxu0 0
    %1056 = vmatprep.subr.bf16.mxu0 0
    %1057 = vmatpush1.bf16.msra.mxu0 0
    %1058 = vmatprep.subr.bf16.mxu0 0
    %1059 = vmatpush1.bf16.msra.mxu0 0
    %1060 = vmatprep.subr.bf16.mxu0 0
    %1061 = vmatpush1.bf16.msra.mxu0 0
    %1062 = vmatprep.subr.bf16.mxu0 0
    %1063 = vmatpush1.bf16.msra.mxu0 0
    %1064 = vmatprep.subr.bf16.mxu0 0
    %1065 = vmatpush1.bf16.msra.mxu0 0
    %1066 = vmatprep.subr.bf16.mxu0 0
    %1067 = vmatpush1.bf16.msra.mxu0 0
    %1068 = vmatprep.subr.bf16.mxu0 0
    %1069 = vmatpush1.bf16.msra.mxu0 %v1049
    %1070 = vmatprep.subr.bf16.mxu0 0
    %1071 = vmatpush2.bf16.msra.mxu0 0
    %1072 = vmatprep.subr.bf16.mxu0 0
    %1073 = vmatpush2.bf16.msra.mxu0 0
    %1074 = vmatprep.subr.bf16.mxu0 0
    %1075 = vmatpush2.bf16.msra.mxu0 0
    %1076 = vmatprep.subr.bf16.mxu0 0
    %1077 = vmatpush2.bf16.msra.mxu0 0
    %1078 = vmatprep.subr.bf16.mxu0 0
    %1079 = vmatpush2.bf16.msra.mxu0 0
    %1080 = vmatprep.subr.bf16.mxu0 0
    %1081 = vmatpush2.bf16.msra.mxu0 0
    %1082 = vmatprep.subr.bf16.mxu0 0
    %1083 = vmatpush2.bf16.msra.mxu0 0
    %1084 = vmatprep.subr.bf16.mxu0 0
    %1085 = vmatpush2.bf16.msra.mxu0 0
    %1086 = vmatprep.mubr.bf16.mxu0 0
    %1087 = vmatmul.mubr.bf16.gmra.mxu0 %v1052
    %v1088 = vpop.f32.mrf.mxu0
    %v1089 = vadd.f32 0.0, %v1088
    %v1090 = vpop.f32.mrf.mxu0
    %v1091 = vpop.f32.mrf.mxu0
    %v1092 = vadd.f32 0.0, %v1091
    %v1093 = vpop.f32.mrf.mxu0
    %1094 = vdwg.mxu0
    %1095 = vrot.lane.b32.xlu0 %v851, 112
    %v1096 = vpop.permute.xlu0 %1095
    %1097 = vrot.lane.b32.xlu0 %v852, 80
    %v1098 = vpop.permute.xlu0 %1097
    %v1100 = vsel %vm101, %v1096, 0
    %v1103 = vsel %vm101, %v1098, 0
    %1105 = vmatprep.subr.bf16.mxu0 0
    %1106 = vmatpush1.bf16.xpose.msra.mxu0 0
    %1107 = vmatprep.subr.bf16.mxu0 0
    %1108 = vmatpush1.bf16.xpose.msra.mxu0 0
    %1109 = vmatprep.subr.bf16.mxu0 0
    %1110 = vmatpush1.bf16.xpose.msra.mxu0 0
    %1111 = vmatprep.subr.bf16.mxu0 0
    %1112 = vmatpush1.bf16.xpose.msra.mxu0 0
    %1113 = vmatprep.subr.bf16.mxu0 0
    %1114 = vmatpush1.bf16.xpose.msra.mxu0 0
    %1115 = vmatprep.subr.bf16.mxu0 0
    %1116 = vmatpush1.bf16.xpose.msra.mxu0 0
    %1117 = vmatprep.subr.bf16.mxu0 0
    %1118 = vmatpush1.bf16.xpose.msra.mxu0 0
    %1119 = vmatprep.subr.bf16.mxu0 0
    %1120 = vmatpush1.bf16.xpose.msra.mxu0 %v1103
    %1121 = vmatprep.subr.bf16.mxu0 0
    %1122 = vmatpush2.bf16.xpose.msra.mxu0 0
    %1123 = vmatprep.subr.bf16.mxu0 0
    %1124 = vmatpush2.bf16.xpose.msra.mxu0 0
    %1125 = vmatprep.subr.bf16.mxu0 0
    %1126 = vmatpush2.bf16.xpose.msra.mxu0 0
    %1127 = vmatprep.subr.bf16.mxu0 0
    %1128 = vmatpush2.bf16.xpose.msra.mxu0 0
    %1129 = vmatprep.subr.bf16.mxu0 0
    %1130 = vmatpush2.bf16.xpose.msra.mxu0 0
    %1131 = vmatprep.subr.bf16.mxu0 0
    %1132 = vmatpush2.bf16.xpose.msra.mxu0 0
    %1133 = vmatprep.subr.bf16.mxu0 0
    %1134 = vmatpush2.bf16.xpose.msra.mxu0 0
    %1135 = vmatprep.subr.bf16.mxu0 0
    %1136 = vmatpush2.bf16.xpose.msra.mxu0 0
    %1137 = vmatprep.mubr.bf16.mxu0 0
    %1138 = vmatmul.mubr.bf16.gmra.mxu0 %v1100
    %v1139 = vpop.f32.mrf.mxu0
    %v1140 = vadd.f32 %v24, %v1139
    %v1141 = vpop.f32.mrf.mxu0
    %v1142 = vpop.f32.mrf.mxu0
    %v1143 = vadd.f32 %v25, %v1142
    %v1144 = vpop.f32.mrf.mxu0
    %1145 = vdwg.mxu0
    %v1146 = vsel %vm149, %v1140, -inf
    %1147 = vmax.xlane.f32.xlu0 %v1146
    %v1148 = vpop.xlane.xlu0 %1147
    %v1149 = vsel %vm149, %v1143, -inf
    %1150 = vmax.xlane.f32.xlu0 %v1149
    %v1151 = vpop.xlane.xlu0 %1150
    %v1152 = vsub.f32 %v1140, %v1148
    %v1153 = vsub.f32 %v1143, %v1151
    %v1154 = vmul.f32 %v1152, 1.442695
    %v1155 = vpow.pop %v1154
    %v1156 = vmul.f32 %v1153, 1.442695
    %v1157 = vpow.pop %v1156
    %v1158 = vsel %vm149, %v1155, 0.0
    %1159 = vadd.xlane.f32.xlu0 %v1158
    %v1160 = vpop.xlane.xlu0 %1159
    %v1161 = vsel %vm149, %v1157, 0.0
    %1162 = vadd.xlane.f32.xlu0 %v1161
    %v1163 = vpop.xlane.xlu0 %1162
    %v1164 = vrcp.pop %v1160
    %v1165 = vrcp.pop %v1163
    %v1166 = vmul.f32 %v1155, %v1164
    %v1167 = vmul.f32 %v1157, %v1165
    %v1168 = vpack.c.bf16 %v1167, %v1166
    %1169 = vrot.lane.b32.xlu0 %v852, 48
    %v1170 = vpop.permute.xlu0 %1169
    %v1173 = vsel %vm149, %v1168, 0
    %1175 = vmatprep.subr.bf16.mxu0 0
    %1176 = vmatpush1.bf16.msra.mxu0 0
    %1177 = vmatprep.subr.bf16.mxu0 0
    %1178 = vmatpush1.bf16.msra.mxu0 0
    %1179 = vmatprep.subr.bf16.mxu0 0
    %1180 = vmatpush1.bf16.msra.mxu0 0
    %1181 = vmatprep.subr.bf16.mxu0 0
    %1182 = vmatpush1.bf16.msra.mxu0 0
    %1183 = vmatprep.subr.bf16.mxu0 0
    %1184 = vmatpush1.bf16.msra.mxu0 0
    %1185 = vmatprep.subr.bf16.mxu0 0
    %1186 = vmatpush1.bf16.msra.mxu0 0
    %1187 = vmatprep.subr.bf16.mxu0 0
    %1188 = vmatpush1.bf16.msra.mxu0 0
    %1189 = vmatprep.subr.bf16.mxu0 0
    %1190 = vmatpush1.bf16.msra.mxu0 %v1170
    %1191 = vmatprep.subr.bf16.mxu0 0
    %1192 = vmatpush2.bf16.msra.mxu0 0
    %1193 = vmatprep.subr.bf16.mxu0 0
    %1194 = vmatpush2.bf16.msra.mxu0 0
    %1195 = vmatprep.subr.bf16.mxu0 0
    %1196 = vmatpush2.bf16.msra.mxu0 0
    %1197 = vmatprep.subr.bf16.mxu0 0
    %1198 = vmatpush2.bf16.msra.mxu0 0
    %1199 = vmatprep.subr.bf16.mxu0 0
    %1200 = vmatpush2.bf16.msra.mxu0 0
    %1201 = vmatprep.subr.bf16.mxu0 0
    %1202 = vmatpush2.bf16.msra.mxu0 0
    %1203 = vmatprep.subr.bf16.mxu0 0
    %1204 = vmatpush2.bf16.msra.mxu0 0
    %1205 = vmatprep.subr.bf16.mxu0 0
    %1206 = vmatpush2.bf16.msra.mxu0 0
    %1207 = vmatprep.mubr.bf16.mxu0 0
    %1208 = vmatmul.mubr.bf16.gmra.mxu0 %v1173
    %v1209 = vpop.f32.mrf.mxu0
    %v1210 = vadd.f32 0.0, %v1209
    %v1211 = vpop.f32.mrf.mxu0
    %v1212 = vpop.f32.mrf.mxu0
    %v1213 = vadd.f32 0.0, %v1212
    %v1214 = vpop.f32.mrf.mxu0
    %1215 = vdwg.mxu0
    %1216 = vrot.lane.b32.xlu0 %v851, 104
    %v1217 = vpop.permute.xlu0 %1216
    %1218 = vrot.lane.b32.xlu0 %v852, 72
    %v1219 = vpop.permute.xlu0 %1218
    %v1221 = vsel %vm101, %v1217, 0
    %v1224 = vsel %vm101, %v1219, 0
    %1226 = vmatprep.subr.bf16.mxu0 0
    %1227 = vmatpush1.bf16.xpose.msra.mxu0 0
    %1228 = vmatprep.subr.bf16.mxu0 0
    %1229 = vmatpush1.bf16.xpose.msra.mxu0 0
    %1230 = vmatprep.subr.bf16.mxu0 0
    %1231 = vmatpush1.bf16.xpose.msra.mxu0 0
    %1232 = vmatprep.subr.bf16.mxu0 0
    %1233 = vmatpush1.bf16.xpose.msra.mxu0 0
    %1234 = vmatprep.subr.bf16.mxu0 0
    %1235 = vmatpush1.bf16.xpose.msra.mxu0 0
    %1236 = vmatprep.subr.bf16.mxu0 0
    %1237 = vmatpush1.bf16.xpose.msra.mxu0 0
    %1238 = vmatprep.subr.bf16.mxu0 0
    %1239 = vmatpush1.bf16.xpose.msra.mxu0 0
    %1240 = vmatprep.subr.bf16.mxu0 0
    %1241 = vmatpush1.bf16.xpose.msra.mxu0 %v1224
    %1242 = vmatprep.subr.bf16.mxu0 0
    %1243 = vmatpush2.bf16.xpose.msra.mxu0 0
    %1244 = vmatprep.subr.bf16.mxu0 0
    %1245 = vmatpush2.bf16.xpose.msra.mxu0 0
    %1246 = vmatprep.subr.bf16.mxu0 0
    %1247 = vmatpush2.bf16.xpose.msra.mxu0 0
    %1248 = vmatprep.subr.bf16.mxu0 0
    %1249 = vmatpush2.bf16.xpose.msra.mxu0 0
    %1250 = vmatprep.subr.bf16.mxu0 0
    %1251 = vmatpush2.bf16.xpose.msra.mxu0 0
    %1252 = vmatprep.subr.bf16.mxu0 0
    %1253 = vmatpush2.bf16.xpose.msra.mxu0 0
    %1254 = vmatprep.subr.bf16.mxu0 0
    %1255 = vmatpush2.bf16.xpose.msra.mxu0 0
    %1256 = vmatprep.subr.bf16.mxu0 0
    %1257 = vmatpush2.bf16.xpose.msra.mxu0 0
    %1258 = vmatprep.mubr.bf16.mxu0 0
    %1259 = vmatmul.mubr.bf16.gmra.mxu0 %v1221
    %v1260 = vpop.f32.mrf.mxu0
    %v1261 = vadd.f32 %v24, %v1260
    %v1262 = vpop.f32.mrf.mxu0
    %v1263 = vpop.f32.mrf.mxu0
    %v1264 = vadd.f32 %v25, %v1263
    %v1265 = vpop.f32.mrf.mxu0
    %1266 = vdwg.mxu0
    %v1267 = vsel %vm149, %v1261, -inf
    %1268 = vmax.xlane.f32.xlu0 %v1267
    %v1269 = vpop.xlane.xlu0 %1268
    %v1270 = vsel %vm149, %v1264, -inf
    %1271 = vmax.xlane.f32.xlu0 %v1270
    %v1272 = vpop.xlane.xlu0 %1271
    %v1273 = vsub.f32 %v1261, %v1269
    %v1274 = vsub.f32 %v1264, %v1272
    %v1275 = vmul.f32 %v1273, 1.442695
    %v1276 = vpow.pop %v1275
    %v1277 = vmul.f32 %v1274, 1.442695
    %v1278 = vpow.pop %v1277
    %v1279 = vsel %vm149, %v1276, 0.0
    %1280 = vadd.xlane.f32.xlu0 %v1279
    %v1281 = vpop.xlane.xlu0 %1280
    %v1282 = vsel %vm149, %v1278, 0.0
    %1283 = vadd.xlane.f32.xlu0 %v1282
    %v1284 = vpop.xlane.xlu0 %1283
    %v1285 = vrcp.pop %v1281
    %v1286 = vrcp.pop %v1284
    %v1287 = vmul.f32 %v1276, %v1285
    %v1288 = vmul.f32 %v1278, %v1286
    %v1289 = vpack.c.bf16 %v1288, %v1287
    %1290 = vrot.lane.b32.xlu0 %v852, 40
    %v1291 = vpop.permute.xlu0 %1290
    %v1294 = vsel %vm149, %v1289, 0
    %1296 = vmatprep.subr.bf16.mxu0 0
    %1297 = vmatpush1.bf16.msra.mxu0 0
    %1298 = vmatprep.subr.bf16.mxu0 0
    %1299 = vmatpush1.bf16.msra.mxu0 0
    %1300 = vmatprep.subr.bf16.mxu0 0
    %1301 = vmatpush1.bf16.msra.mxu0 0
    %1302 = vmatprep.subr.bf16.mxu0 0
    %1303 = vmatpush1.bf16.msra.mxu0 0
    %1304 = vmatprep.subr.bf16.mxu0 0
    %1305 = vmatpush1.bf16.msra.mxu0 0
    %1306 = vmatprep.subr.bf16.mxu0 0
    %1307 = vmatpush1.bf16.msra.mxu0 0
    %1308 = vmatprep.subr.bf16.mxu0 0
    %1309 = vmatpush1.bf16.msra.mxu0 0
    %1310 = vmatprep.subr.bf16.mxu0 0
    %1311 = vmatpush1.bf16.msra.mxu0 %v1291
    %1312 = vmatprep.subr.bf16.mxu0 0
    %1313 = vmatpush2.bf16.msra.mxu0 0
    %1314 = vmatprep.subr.bf16.mxu0 0
    %1315 = vmatpush2.bf16.msra.mxu0 0
    %1316 = vmatprep.subr.bf16.mxu0 0
    %1317 = vmatpush2.bf16.msra.mxu0 0
    %1318 = vmatprep.subr.bf16.mxu0 0
    %1319 = vmatpush2.bf16.msra.mxu0 0
    %1320 = vmatprep.subr.bf16.mxu0 0
    %1321 = vmatpush2.bf16.msra.mxu0 0
    %1322 = vmatprep.subr.bf16.mxu0 0
    %1323 = vmatpush2.bf16.msra.mxu0 0
    %1324 = vmatprep.subr.bf16.mxu0 0
    %1325 = vmatpush2.bf16.msra.mxu0 0
    %1326 = vmatprep.subr.bf16.mxu0 0
    %1327 = vmatpush2.bf16.msra.mxu0 0
    %1328 = vmatprep.mubr.bf16.mxu0 0
    %1329 = vmatmul.mubr.bf16.gmra.mxu0 %v1294
    %v1330 = vpop.f32.mrf.mxu0
    %v1331 = vadd.f32 0.0, %v1330
    %v1332 = vpop.f32.mrf.mxu0
    %v1333 = vpop.f32.mrf.mxu0
    %v1334 = vadd.f32 0.0, %v1333
    %v1335 = vpop.f32.mrf.mxu0
    %1336 = vdwg.mxu0
    %1339 = vrot.lane.b32.xlu0 %v1089, 8
    %v1340 = vpop.permute.xlu0 %1339
    %1341 = vrot.lane.b32.xlu0 %v1092, 8
    %v1342 = vpop.permute.xlu0 %1341
    %1347 = vrot.lane.b32.xlu0 %v1210, 16
    %v1348 = vpop.permute.xlu0 %1347
    %1349 = vrot.lane.b32.xlu0 %v1213, 16
    %v1350 = vpop.permute.xlu0 %1349
    %1355 = vrot.lane.b32.xlu0 %v1331, 24
    %v1356 = vpop.permute.xlu0 %1355
    %1357 = vrot.lane.b32.xlu0 %v1334, 24
    %v1358 = vpop.permute.xlu0 %1357
    %v1361 = vsel %vm101, %v967, %v1340
    %v1362 = vsel %vm101, %v970, %v1342
    %v1363 = vsel %vm149, %v1361, %v1348
    %v1364 = vsel %vm149, %v1362, %v1350
    %v1365 = vsel %vm611, %v1363, %v1356
    %v1366 = vsel %vm611, %v1364, %v1358
    %1369 = vrot.lane.b32.xlu0 %v1045, 16
    %v1370 = vpop.permute.xlu0 %1369
    %1371 = vrot.lane.b32.xlu0 %v1046, 16
    %v1372 = vpop.permute.xlu0 %1371
    %1377 = vrot.lane.b32.xlu0 %v1166, 32
    %v1378 = vpop.permute.xlu0 %1377
    %1379 = vrot.lane.b32.xlu0 %v1167, 32
    %v1380 = vpop.permute.xlu0 %1379
    %1385 = vrot.lane.b32.xlu0 %v1287, 48
    %v1386 = vpop.permute.xlu0 %1385
    %1387 = vrot.lane.b32.xlu0 %v1288, 48
    %v1388 = vpop.permute.xlu0 %1387
    %v1391 = vsel %vm149, %v923, %v1370
    %v1392 = vsel %vm149, %v924, %v1372
    %v1393 = vsel %vm52, %v1391, %v1378
    %v1394 = vsel %vm52, %v1392, %v1380
    %v1395 = vsel %vm642, %v1393, %v1386
    %v1396 = vsel %vm642, %v1394, %v1388
    %v1397 = vpack.c.bf16 %v1366, %v1365
    %1398 = vrot.lane.b32.xlu0 %v758, 32
    %v1399 = vpop.permute.xlu0 %1398
    %1400 = vrot.lane.b32.xlu0 %v759, 32
    %v1401 = vpop.permute.xlu0 %1400
    %1405 = vrot.lane.b32.xlu0 %v749, 32
    %v1406 = vpop.permute.xlu0 %1405
    %v1409 = vsel %vm52, %v1397, 0
    %1411 = vmatprep.subr.bf16.mxu0 0
    %1412 = vmatpush1.bf16.msra.mxu0 0
    %1413 = vmatprep.subr.bf16.mxu0 0
    %1414 = vmatpush1.bf16.msra.mxu0 0
    %1415 = vmatprep.subr.bf16.mxu0 0
    %1416 = vmatpush1.bf16.msra.mxu0 0
    %1417 = vmatprep.subr.bf16.mxu0 0
    %1418 = vmatpush1.bf16.msra.mxu0 0
    %1419 = vmatprep.subr.bf16.mxu0 0
    %1420 = vmatpush1.bf16.msra.mxu0 0
    %1421 = vmatprep.subr.bf16.mxu0 0
    %1422 = vmatpush1.bf16.msra.mxu0 0
    %1423 = vmatprep.subr.bf16.mxu0 0
    %1424 = vmatpush1.bf16.msra.mxu0 %v1401
    %1425 = vmatprep.subr.bf16.mxu0 0
    %1426 = vmatpush1.bf16.msra.mxu0 %v1399
    %1427 = vmatprep.subr.bf16.mxu0 0
    %1428 = vmatpush2.bf16.msra.mxu0 0
    %1429 = vmatprep.subr.bf16.mxu0 0
    %1430 = vmatpush2.bf16.msra.mxu0 0
    %1431 = vmatprep.subr.bf16.mxu0 0
    %1432 = vmatpush2.bf16.msra.mxu0 0
    %1433 = vmatprep.subr.bf16.mxu0 0
    %1434 = vmatpush2.bf16.msra.mxu0 0
    %1435 = vmatprep.subr.bf16.mxu0 0
    %1436 = vmatpush2.bf16.msra.mxu0 0
    %1437 = vmatprep.subr.bf16.mxu0 0
    %1438 = vmatpush2.bf16.msra.mxu0 0
    %1439 = vmatprep.subr.bf16.mxu0 0
    %1440 = vmatpush2.bf16.msra.mxu0 0
    %1441 = vmatprep.subr.bf16.mxu0 0
    %1442 = vmatpush2.bf16.msra.mxu0 0
    %1443 = vmatprep.mubr.bf16.mxu0 0
    %1444 = vmatmul.mubr.bf16.gmra.mxu0 %v1409
    %v1445 = vpop.f32.mrf.mxu0
    %v1446 = vadd.f32 %v1406, %v1445
    %v1447 = vpop.f32.mrf.mxu0
    %v1448 = vpop.f32.mrf.mxu0
    %v1449 = vadd.f32 %v1406, %v1448
    %v1450 = vpop.f32.mrf.mxu0
    %1451 = vdwg.mxu0
    %v1452 = vadd.f32 %v1446, %v739
    %v1453 = vadd.f32 %v1449, %v740
    %v1454 = vsel %vm52, %v1452, 0.0
    %1455 = vadd.xlane.f32.xlu0 %v1454
    %v1456 = vpop.xlane.xlu0 %1455
    %v1457 = vsel %vm52, %v1453, 0.0
    %1458 = vadd.xlane.f32.xlu0 %v1457
    %v1459 = vpop.xlane.xlu0 %1458
    %v1460 = vmul.f32 %v1456, %v708
    %v1461 = vmul.f32 %v1459, %v708
    %v1462 = vsub.f32 %v1452, %v1460
    %v1463 = vsub.f32 %v1453, %v1461
    %v1464 = vmul.f32 %v1462, %v1462
    %v1465 = vmul.f32 %v1463, %v1463
    %v1466 = vsel %vm52, %v1464, 0.0
    %1467 = vadd.xlane.f32.xlu0 %v1466
    %v1468 = vpop.xlane.xlu0 %1467
    %v1469 = vsel %vm52, %v1465, 0.0
    %1470 = vadd.xlane.f32.xlu0 %v1469
    %v1471 = vpop.xlane.xlu0 %1470
    %v1472 = vmul.f32 %v1468, %v708
    %v1473 = vmul.f32 %v1471, %v708
    %v1474 = vadd.f32 %v1472, 1e-05
    %v1475 = vadd.f32 %v1473, 1e-05
    %v1476 = vrsqrt.pop %v1474
    %v1477 = vrsqrt.pop %v1475
    %v1478 = vmul.f32 %v1462, %v1476
    %v1479 = vmul.f32 %v1463, %v1477
    %1480 = vrot.lane.b32.xlu0 %v732, 64
    %v1481 = vpop.permute.xlu0 %1480
    %v1483 = vmul.f32 %v1478, %v1481
    %v1484 = vmul.f32 %v1479, %v1481
    %1485 = vrot.lane.b32.xlu0 %v732, 32
    %v1486 = vpop.permute.xlu0 %1485
    %v1488 = vadd.f32 %v1483, %v1486
    %v1489 = vadd.f32 %v1484, %v1486
    %v1490 = vld [vmem:[%s3 + $0x20] sm:$0xf]
    %v1491 = vld [vmem:[%s3 + $0x24] sm:$0xf]
    %v1492 = vld [vmem:[%s3 + $0x28] sm:$0xf]
    %v1493 = vld [vmem:[%s3 + $0x2c] sm:$0xf]
    %v1494 = vld [vmem:[%s3 + $0x30] sm:$0xf]
    %v1495 = vld [vmem:[%s3 + $0x34] sm:$0xf]
    %v1496 = vld [vmem:[%s3 + $0x38] sm:$0xf]
    %v1497 = vld [vmem:[%s3 + $0x3c] sm:$0xf]
    %v1498 = vld [vmem:[%s3 + $0x40] sm:$0xf]
    %v1499 = vld [vmem:[%s3 + $0x44] sm:$0xf]
    %v1500 = vld [vmem:[%s3 + $0x48] sm:$0xf]
    %v1501 = vld [vmem:[%s3 + $0x4c] sm:$0xf]
    %v1502 = vpack.c.bf16 %v1489, %v1488
    %v1503 = vlaneseq
    %v1504 = vshrl.u32 %v1503, 7
    %v1505 = vsub.s32 3, %v1504
    %v1506 = vrot.slane %v30, %v1505
    %v1511 = vunpack.c.l.b16 %v1490
    %v1512 = vunpack.c.l.b16 %v1491
    %v1513 = vunpack.c.l.b16 %v1492
    %v1514 = vunpack.c.l.b16 %v1493
    %v1515 = vpack.c.b16 %v1512, %v1511
    %v1516 = vpack.c.b16 %v1514, %v1513
    %v1520 = vsel %vm52, %v1502, 0
    %1522 = vmatprep.subr.bf16.mxu0 0
    %1523 = vmatpush1.bf16.msra.mxu0 0
    %1524 = vmatprep.subr.bf16.mxu0 0
    %1525 = vmatpush1.bf16.msra.mxu0 0
    %1526 = vmatprep.subr.bf16.mxu0 0
    %1527 = vmatpush1.bf16.msra.mxu0 0
    %1528 = vmatprep.subr.bf16.mxu0 0
    %1529 = vmatpush1.bf16.msra.mxu0 0
    %1530 = vmatprep.subr.bf16.mxu0 0
    %1531 = vmatpush1.bf16.msra.mxu0 0
    %1532 = vmatprep.subr.bf16.mxu0 0
    %1533 = vmatpush1.bf16.msra.mxu0 0
    %1534 = vmatprep.subr.bf16.mxu0 0
    %1535 = vmatpush1.bf16.msra.mxu0 %v1516
    %1536 = vmatprep.subr.bf16.mxu0 0
    %1537 = vmatpush1.bf16.msra.mxu0 %v1515
    %1538 = vmatprep.subr.bf16.mxu0 0
    %1539 = vmatpush2.bf16.msra.mxu0 0
    %1540 = vmatprep.subr.bf16.mxu0 0
    %1541 = vmatpush2.bf16.msra.mxu0 0
    %1542 = vmatprep.subr.bf16.mxu0 0
    %1543 = vmatpush2.bf16.msra.mxu0 0
    %1544 = vmatprep.subr.bf16.mxu0 0
    %1545 = vmatpush2.bf16.msra.mxu0 0
    %1546 = vmatprep.subr.bf16.mxu0 0
    %1547 = vmatpush2.bf16.msra.mxu0 0
    %1548 = vmatprep.subr.bf16.mxu0 0
    %1549 = vmatpush2.bf16.msra.mxu0 0
    %1550 = vmatprep.subr.bf16.mxu0 0
    %1551 = vmatpush2.bf16.msra.mxu0 0
    %1552 = vmatprep.subr.bf16.mxu0 0
    %1553 = vmatpush2.bf16.msra.mxu0 0
    %1554 = vmatprep.mubr.bf16.mxu0 0
    %1555 = vmatmul.mubr.bf16.gmra.mxu0 %v1520
    %v1556 = vpop.f32.mrf.mxu0
    %v1557 = vadd.f32 %v1506, %v1556
    %v1558 = vpop.f32.mrf.mxu0
    %v1559 = vpop.f32.mrf.mxu0
    %v1560 = vadd.f32 %v1506, %v1559
    %v1561 = vpop.f32.mrf.mxu0
    %1562 = vdwg.mxu0
    %v1563 = vmax.f32 %v1557, 0.0
    %v1564 = vmax.f32 %v1560, 0.0
    %v1565 = vpack.c.bf16 %v1564, %v1563
    %v1574 = vunpack.c.l.b16 %v1494
    %v1575 = vunpack.c.l.b16 %v1495
    %v1576 = vunpack.c.l.b16 %v1496
    %v1577 = vunpack.c.l.b16 %v1497
    %v1578 = vunpack.c.l.b16 %v1498
    %v1579 = vunpack.c.l.b16 %v1499
    %v1580 = vunpack.c.l.b16 %v1500
    %v1581 = vunpack.c.l.b16 %v1501
    %v1582 = vpack.c.b16 %v1575, %v1574
    %v1583 = vpack.c.b16 %v1577, %v1576
    %v1584 = vpack.c.b16 %v1579, %v1578
    %v1585 = vpack.c.b16 %v1581, %v1580
    %1591 = vrot.lane.b32.xlu0 %v1506, 64
    %v1592 = vpop.permute.xlu0 %1591
    %vm1594 = vcmask 523264
    %v1596 = vsel %vm1594, %v1565, 0
    %1598 = vmatprep.subr.bf16.mxu0 0
    %1599 = vmatpush1.bf16.msra.mxu0 0
    %1600 = vmatprep.subr.bf16.mxu0 0
    %1601 = vmatpush1.bf16.msra.mxu0 0
    %1602 = vmatprep.subr.bf16.mxu0 0
    %1603 = vmatpush1.bf16.msra.mxu0 0
    %1604 = vmatprep.subr.bf16.mxu0 0
    %1605 = vmatpush1.bf16.msra.mxu0 0
    %1606 = vmatprep.subr.bf16.mxu0 0
    %1607 = vmatpush1.bf16.msra.mxu0 %v1585
    %1608 = vmatprep.subr.bf16.mxu0 0
    %1609 = vmatpush1.bf16.msra.mxu0 %v1584
    %1610 = vmatprep.subr.bf16.mxu0 0
    %1611 = vmatpush1.bf16.msra.mxu0 %v1583
    %1612 = vmatprep.subr.bf16.mxu0 0
    %1613 = vmatpush1.bf16.msra.mxu0 %v1582
    %1614 = vmatprep.subr.bf16.mxu0 0
    %1615 = vmatpush2.bf16.msra.mxu0 0
    %1616 = vmatprep.subr.bf16.mxu0 0
    %1617 = vmatpush2.bf16.msra.mxu0 0
    %1618 = vmatprep.subr.bf16.mxu0 0
    %1619 = vmatpush2.bf16.msra.mxu0 0
    %1620 = vmatprep.subr.bf16.mxu0 0
    %1621 = vmatpush2.bf16.msra.mxu0 0
    %1622 = vmatprep.subr.bf16.mxu0 0
    %1623 = vmatpush2.bf16.msra.mxu0 0
    %1624 = vmatprep.subr.bf16.mxu0 0
    %1625 = vmatpush2.bf16.msra.mxu0 0
    %1626 = vmatprep.subr.bf16.mxu0 0
    %1627 = vmatpush2.bf16.msra.mxu0 0
    %1628 = vmatprep.subr.bf16.mxu0 0
    %1629 = vmatpush2.bf16.msra.mxu0 0
    %1630 = vmatprep.mubr.bf16.mxu0 0
    %1631 = vmatmul.mubr.bf16.gmra.mxu0 %v1596
    %v1632 = vpop.f32.mrf.mxu0
    %v1633 = vadd.f32 %v1592, %v1632
    %v1634 = vpop.f32.mrf.mxu0
    %v1635 = vpop.f32.mrf.mxu0
    %v1636 = vadd.f32 %v1592, %v1635
    %v1637 = vpop.f32.mrf.mxu0
    %1638 = vdwg.mxu0
    %v1639 = vadd.f32 %v1633, %v1488
    %v1640 = vadd.f32 %v1636, %v1489
    %v1641 = vsel %vm52, %v1639, 0.0
    %1642 = vadd.xlane.f32.xlu0 %v1641
    %v1643 = vpop.xlane.xlu0 %1642
    %v1644 = vsel %vm52, %v1640, 0.0
    %1645 = vadd.xlane.f32.xlu0 %v1644
    %v1646 = vpop.xlane.xlu0 %1645
    %v1647 = vmul.f32 %v1643, %v708
    %v1648 = vmul.f32 %v1646, %v708
    %v1649 = vsub.f32 %v1639, %v1647
    %v1650 = vsub.f32 %v1640, %v1648
    %v1651 = vmul.f32 %v1649, %v1649
    %v1652 = vmul.f32 %v1650, %v1650
    %v1653 = vsel %vm52, %v1651, 0.0
    %1654 = vadd.xlane.f32.xlu0 %v1653
    %v1655 = vpop.xlane.xlu0 %1654
    %v1656 = vsel %vm52, %v1652, 0.0
    %1657 = vadd.xlane.f32.xlu0 %v1656
    %v1658 = vpop.xlane.xlu0 %1657
    %v1659 = vmul.f32 %v1655, %v708
    %v1660 = vmul.f32 %v1658, %v708
    %v1661 = vadd.f32 %v1659, 1e-05
    %v1662 = vadd.f32 %v1660, 1e-05
    %v1663 = vrsqrt.pop %v1661
    %v1664 = vrsqrt.pop %v1662
    %v1665 = vmul.f32 %v1649, %v1663
    %v1666 = vmul.f32 %v1650, %v1664
    %1667 = vrot.lane.b32.xlu0 %v1506, 32
    %v1668 = vpop.permute.xlu0 %1667
    %v1670 = vmul.f32 %v1665, %v1668
    %v1671 = vmul.f32 %v1666, %v1668
    %v1672 = vlaneseq
    %v1673 = vshrl.u32 %v1672, 7
    %v1674 = vsub.s32 4, %v1673
    %v1675 = vrot.slane %v30, %v1674
    %v1676 = vadd.f32 %v1670, %v1675
    %v1677 = vadd.f32 %v1671, %v1675
    %1678 = vst.msk [vmem:[#allocation2] sm:$0xff] %vm52, %v1676
    %1679 = vst.msk [vmem:[#allocation2 + $0x8] sm:$0xff] %vm52, %v1677
    %1682 = vrot.lane.b32.xlu0 %v1395, 64
    %v1683 = vpop.permute.xlu0 %1682
    %1684 = vrot.lane.b32.xlu0 %v1396, 64
    %v1685 = vpop.permute.xlu0 %1684
    %v1688 = vsel %vm1594, %v643, %v1683
    %v1689 = vsel %vm1594, %v644, %v1685
    %1690 = vst [vmem:[%s6] sm:$0xff] %v1688
    %1691 = vst [vmem:[%s6 + $0x8] sm:$0xff] %v1689
    // Predicated region
    $region22: #{decoder_layer.1} parent=1 // pred_check
      _
    $region23: #{decoder_layer.1} parent=1 // pred_check_branch
      %1693 = sbr.rel (0) target = $region25
    $region24: #{decoder_layer.1} parent=1 // pred_region
      %s1695 = ssub.s32 256, 256
      %1696 = vsyncadd [#allocation3], %s1695
      %s1697 = sshll.u32 [#allocation2], 4
      %s1698 = int_to_ptr.vmem [resolvable:$true] %s1697
      %1703 = dma.vmem_to_hbm [thread:$0]  %s1698, 256, %s5, [#allocation3], 128, 128, 8
    $region25: #{decoder_layer.1} parent=1 // pred_fallthru
      _
    // Predicated region
    $region26: #{decoder_layer.1} parent=1 // pred_check
      _
    $region27: #{decoder_layer.1} parent=1 // pred_check_branch
      %1705 = sbr.rel (0) target = $region29
    $region28: #{decoder_layer.1} parent=1 // pred_region
      _
    $region29: #{decoder_layer.1} parent=1 // pred_fallthru
      _
    // Predicated region
    $region30: #{decoder_layer.1} parent=1 // pred_check
      _
    $region31: #{decoder_layer.1} parent=1 // pred_check_branch
      %1707 = sbr.rel (0) target = $region33
    $region32: #{decoder_layer.1} parent=1 // pred_region
      %1708 = dma.done [#allocation3], 256
    $region33: #{decoder_layer.1} parent=1 // pred_fallthru
      _
    // Predicated region
    $region34: #{decoder_layer.1} parent=1 // pred_check
      _
    $region35: #{decoder_layer.1} parent=1 // pred_check_branch
      %1710 = sbr.rel (0) target = $region37
    $region36: #{decoder_layer.1} parent=1 // pred_region
      _
    $region37: #{decoder_layer.1} parent=1 // pred_fallthru
      _
    %1711 = vsyncpa [#allocation3], 1

</llo_original>
